<compile_context>
chip_gen: v7x
topology: tpu7x:2x2x1
jax: 0.10.0
libtpu: 0.0.40
codegen_flags: <defaults>
</compile_context>

<pallas_src>
import functools

import jax
import jax.numpy as jnp
from jax.experimental import pallas as pl
from jax.experimental.pallas import tpu as pltpu


def _round_up(n, m):
    return ((n + m - 1) // m) * m


def _expand_norm_shuffle_kernel(x_ref, w_ref, sm_ref, stg_ref, beta_ref, o_ref,
                                *, eps):
    # x_ref:    (n_tok, dim)        n_tok = th * W tokens (th rows of H, all of W)
    # w_ref:    (dim, c_exp)        c_exp = p*p*dim
    # sm_ref:   (c_exp, p*p)        chunk indicator / dim       (-> chunk means)
    # stg_ref:  (p*p, c_exp)        chunk indicator * tiled gamma (-> broadcasts)
    # beta_ref: (1, c_exp)          tiled beta
    # o_ref:    (th, p, W, p*dim)   final pixel-shuffled layout
    th, p, W, pd = o_ref.shape
    n_tok = th * W

    # Linear expand on the MXU, f32 accumulation.
    y = jnp.dot(x_ref[...], w_ref[...], preferred_element_type=jnp.float32)

    # Segmented LayerNorm statistics over contiguous dim-sized chunks, done with
    # tiny matmuls so all elementwise work stays on the lane-dense (n_tok, c_exp)
    # layout (no (n_tok, 16, dim) reshape / relayout).
    sm = sm_ref[...]                                                    # (c_exp, p*p)
    mean = jnp.dot(y, sm, preferred_element_type=jnp.float32)           # (n_tok, p*p)
    meansq = jnp.dot(y * y, sm, preferred_element_type=jnp.float32)     # (n_tok, p*p)
    # Clamp: E[y^2] - E[y]^2 can dip slightly negative in f32 (cancellation).
    var = jnp.maximum(meansq - mean * mean, 0.0)
    rstd = jax.lax.rsqrt(var + eps)
    mr = mean * rstd

    # Normalize / affine / cast / store one p1 strip at a time: peak intermediate
    # VMEM is ~1/p of the full-width version, and every store is a lane-dense
    # (th, W, pd) slab of the final layout.
    # TODO(synk): fold `- shift + beta` into one matmul (ones-augmented operand +
    # negated stg with a beta row) once the kernel stops being HBM-store-bound.
    for p1 in range(p):
        lo, hi = p1 * pd, (p1 + 1) * pd
        stg_s = stg_ref[:, lo:hi]                                       # (p*p, pd)
        scale = jnp.dot(rstd, stg_s, preferred_element_type=jnp.float32)   # rstd*gamma
        shift = jnp.dot(mr, stg_s, preferred_element_type=jnp.float32)     # mean*rstd*gamma
        strip = y[:, lo:hi] * scale - shift + beta_ref[:, lo:hi]
        # Keep f32 through the (n_tok, pd) -> (th, W, pd) reshape; cast only at the
        # store so bf16 output never forces a sublane repack on the hot path.
        o_ref[:, p1, :, :] = strip.reshape(th, W, pd).astype(o_ref.dtype)


def _vmem_caps():
    """(physical VMEM bytes, scoped-limit cap) — generation aware."""
    try:
        cap = pltpu.get_tpu_info().vmem_capacity_bytes
    except Exception:  # pragma: no cover - conservative fallback
        cap = 64 << 20
    if cap <= (64 << 20):
        # v7x: 64 MiB per TensorCore; leave headroom for Mosaic internal scratch.
        return cap, 52 << 20
    # v5e / v6e: 128 MiB physical — use most of it for bigger tiles / pipelining.
    return cap, 96 << 20


def _choose_row_tile(BH, W, dim, p, in_itemsize, out_itemsize, max_tokens,
                     tile_budget):
    """Pick th = rows of H per block (a block holds th*W tokens)."""
    c_exp = p * p * dim
    pd = p * dim
    n_chunks = p * p

    # Per-token VMEM bytes, including lane padding and in-kernel intermediates.
    in_tok = _round_up(dim, 128) * in_itemsize              # x row, lane padded
    out_tok = _round_up(c_exp, 128) * out_itemsize          # out row
    inter_tok = (2 * c_exp                                  # y and y*y (f32)
                 + 3 * _round_up(pd, 128)                   # per-strip scale/shift/strip
                 + 6 * _round_up(n_chunks, 128)) * 4        # mean/meansq/var/rstd/mr/...
    per_token = 2 * in_tok + 2 * out_tok + inter_tok        # 2x = double-buffered blocks

    tok_cap = max(W, tile_budget // max(per_token, 1))
    tok_target = max(W, min(max_tokens, tok_cap, BH * W))
    th_target = max(1, min(tok_target // W, BH))
    if BH >= 2:  # keep >= 2 grid steps so both v7x TensorCores get work
        th_target = max(1, min(th_target, BH // 2))

    # Prefer a divisor of BH that yields an EVEN grid length (balanced 2-TC split).
    best, best_even = 1, 0
    for d in range(1, th_target + 1):
        if BH % d == 0:
            best = d
            if (BH // d) % 2 == 0:
                best_even = d
    th = best_even if best_even else best
    # TODO(synk): for prime/awkward BH switch to a pl.cdiv grid with a masked tail
    # block instead of collapsing to tiny divisors.
    return th, per_token


def final_patch_expand_x4(x, w_expand, gamma, beta, *, input_resolution,
                          dim_scale=4, patchsize=4, eps=1e-5,
                          max_tokens_per_block=2048, out_dtype=None):
    """x: (B, H*W, dim). Returns (B, H*dim_scale*W*dim_scale, dim)."""
    H, W = input_resolution
    B, L, dim = x.shape
    assert L == H * W, "input feature has wrong size"
    assert patchsize == dim_scale, "module semantics require patchsize == dim_scale"
    p = dim_scale
    c_exp = p * p * dim
    n_chunks = p * p
    assert w_expand.shape == (dim, c_exp)
    # Lane-dense stores assume p*dim is a multiple of 128 (dim % 32 == 0 for p=4);
    # other dims still work but stores become masked.

    if out_dtype is None:
        out_dtype = x.dtype
    out_dtype = jnp.dtype(out_dtype)
    in_itemsize = jnp.dtype(x.dtype).itemsize
    out_itemsize = out_dtype.itemsize
    w_itemsize = jnp.dtype(w_expand.dtype).itemsize

    # Resident constants (double-buffered by the pipeline), lane/sublane padded.
    const_bytes = 2 * (
        _round_up(dim, 8) * _round_up(c_exp, 128) * w_itemsize          # w_expand
        + _round_up(c_exp, 8) * _round_up(n_chunks, 128) * 4            # sm
        + _round_up(n_chunks, 8) * _round_up(c_exp, 128) * 4            # stg
        + 8 * _round_up(c_exp, 128) * 4)                                # beta row

    _, scoped_cap = _vmem_caps()
    tile_budget = max(W * 4096, scoped_cap - const_bytes - (2 << 20))

    BH = B * H
    th, per_token = _choose_row_tile(BH, W, dim, p, in_itemsize, out_itemsize,
                                     max_tokens_per_block, tile_budget)
    n_tok = th * W
    grid = (BH // th,)

    needed = n_tok * per_token + const_bytes
    vmem_limit = int(min(scoped_cap, max(needed + (4 << 20), 16 << 20)))

    # Host-side constants: chunk-mean matrix, gamma-scaled broadcast matrix, beta.
    chunk_id = jnp.arange(c_exp, dtype=jnp.int32) // dim                 # (c_exp,)
    chunk_ids = jnp.arange(n_chunks, dtype=jnp.int32)
    sm = (chunk_id[:, None] == chunk_ids[None, :]).astype(jnp.float32) * (1.0 / dim)
    gamma_full = jnp.tile(gamma.astype(jnp.float32), n_chunks)           # (c_exp,)
    stg = (chunk_ids[:, None] == chunk_id[None, :]).astype(jnp.float32) \
        * gamma_full[None, :]                                            # (p*p, c_exp)
    beta_full = jnp.tile(beta.astype(jnp.float32), n_chunks).reshape(1, c_exp)

    x2d = x.reshape(BH * W, dim)
    kernel = functools.partial(_expand_norm_shuffle_kernel, eps=eps)

    y4 = pl.pallas_call(
        kernel,
        out_shape=jax.ShapeDtypeStruct((BH, p, W, p * dim), out_dtype),
        grid_spec=pltpu.PrefetchScalarGridSpec(
            num_scalar_prefetch=0,
            grid=grid,
            in_specs=[
                pl.BlockSpec((n_tok, dim), lambda i: (i, 0)),
                pl.BlockSpec((dim, c_exp), lambda i: (0, 0)),
                pl.BlockSpec((c_exp, n_chunks), lambda i: (0, 0)),
                pl.BlockSpec((n_chunks, c_exp), lambda i: (0, 0)),
                pl.BlockSpec((1, c_exp), lambda i: (0, 0)),
            ],
            out_specs=pl.BlockSpec((th, p, W, p * dim), lambda i: (i, 0, 0, 0)),
        ),
        compiler_params=pltpu.CompilerParams(
            dimension_semantics=("parallel",),
            vmem_limit_bytes=vmem_limit,
        ),
        cost_estimate=pl.CostEstimate(
            flops=2 * BH * W * dim * c_exp,
            transcendentals=BH * W * n_chunks,
            bytes_accessed=(x.size * in_itemsize
                            + w_expand.size * w_itemsize
                            + BH * W * c_exp * out_itemsize),
        ),
    )(x2d, w_expand, sm, stg, beta_full)

    # (BH, p, W, p*dim) is already the (B, H, p1, W, p2, dim) memory layout of the
    # rearranged output, so this reshape is a free view (no transpose, no HBM pass).
    return y4.reshape(B, H * p * W * p, dim)


def _reference(x, w_expand, gamma, beta, *, input_resolution, dim_scale=4,
               patchsize=4, eps=1e-5):
    """Pure-JAX reference matching the PyTorch forward."""
    H, W = input_resolution
    B, L, dim = x.shape
    y = jnp.einsum("blc,cd->bld", x, w_expand)
    p = dim_scale
    y = y.reshape(B, H, W, p, p, dim)
    y = jnp.transpose(y, (0, 1, 3, 2, 4, 5)).reshape(B, H * p * W * p, dim)
    mean = jnp.mean(y, axis=-1, keepdims=True)
    var = jnp.mean((y - mean) ** 2, axis=-1, keepdims=True)
    y = (y - mean) * jax.lax.rsqrt(var + eps)
    return y * gamma + beta


if __name__ == "__main__":
    # Small shapes consistent with the module:
    # input_resolution=(8, 8), dim=32 -> x: (B=2, L=64, C=32)
    B = 2
    H, W = 8, 8
    dim = 32
    patchsize = 4
    dim_scale = 4

    key = jax.random.PRNGKey(0)
    kx, kw, kg, kb = jax.random.split(key, 4)

    x = jax.random.normal(kx, (B, H * W, dim), dtype=jnp.float32)
    # nn.Linear(dim, 16*dim, bias=False): torch weight is (16*dim, dim); we store
    # its transpose so the kernel does x @ W.
    w_expand = (jax.random.normal(kw, (dim, patchsize * patchsize * dim),
                                  dtype=jnp.float32) * 0.05)
    gamma = 1.0 + 0.1 * jax.random.normal(kg, (dim,), dtype=jnp.float32)
    beta = 0.1 * jax.random.normal(kb, (dim,), dtype=jnp.float32)

    ref = _reference(
        x, w_expand, gamma, beta,
        input_resolution=(H, W), dim_scale=dim_scale, patchsize=patchsize)

    # f32 output path: tight correctness check against the two-pass reference.
    out = final_patch_expand_x4(
        x, w_expand, gamma, beta,
        input_resolution=(H, W), dim_scale=dim_scale, patchsize=patchsize,
        out_dtype=jnp.float32)
    out = jax.block_until_ready(out)
    assert out.shape == (B, H * dim_scale * W * dim_scale, dim), out.shape
    assert jnp.allclose(out, ref, atol=2e-4, rtol=2e-4), float(
        jnp.max(jnp.abs(out - ref)))

    # bf16 output path: recommended store-bound configuration (halves HBM stores);
    # f32 accumulation/stats inside, so only the final cast loses precision.
    out_bf16 = final_patch_expand_x4(
        x, w_expand, gamma, beta,
        input_resolution=(H, W), dim_scale=dim_scale, patchsize=patchsize,
        out_dtype=jnp.bfloat16)
    out_bf16 = jax.block_until_ready(out_bf16)
    assert out_bf16.dtype == jnp.bfloat16
    assert jnp.allclose(out_bf16.astype(jnp.float32), ref, atol=5e-2, rtol=5e-2), \
        float(jnp.max(jnp.abs(out_bf16.astype(jnp.float32) - ref)))

    print("KERNEL_OK")
</pallas_src>

<mosaic_0001>
module attributes {stable_mosaic.version = 11 : i64} {
  func.func @_expand_norm_shuffle_kernel(%arg0: i32, %arg1: memref<64x32xf32, #tpu.memory_space<vmem>>, %arg2: memref<32x512xf32, #tpu.memory_space<vmem>>, %arg3: memref<512x16xf32, #tpu.memory_space<vmem>>, %arg4: memref<16x512xf32, #tpu.memory_space<vmem>>, %arg5: memref<1x512xf32, #tpu.memory_space<vmem>>, %arg6: memref<8x4x8x128xf32, #tpu.memory_space<vmem>>) attributes {dimension_semantics = [#tpu.dimension_semantics<parallel>], iteration_bounds = array<i64: 2>, scalar_prefetch = 0 : i64, scratch_operands = 0 : i64, tpu.core_type = #tpu.core_type<tc>, window_params = [{transform_indices = @transform_0, window_bounds = array<i64: 64, 32>}, {pipeline_mode = #tpu.pipeline_mode<synchronous>, transform_indices = @transform_1, window_bounds = array<i64: 32, 512>}, {pipeline_mode = #tpu.pipeline_mode<synchronous>, transform_indices = @transform_2, window_bounds = array<i64: 512, 16>}, {pipeline_mode = #tpu.pipeline_mode<synchronous>, transform_indices = @transform_3, window_bounds = array<i64: 16, 512>}, {pipeline_mode = #tpu.pipeline_mode<synchronous>, transform_indices = @transform_4, window_bounds = array<i64: 1, 512>}, {transform_indices = @transform_5, window_bounds = array<i64: 8, 4, 8, 128>}]} {
    %c0 = arith.constant 0 : index
    %c0_0 = arith.constant 0 : index
    %0 = vector.load %arg1[%c0, %c0_0] : memref<64x32xf32, #tpu.memory_space<vmem>>, vector<64x32xf32>
    %c0_1 = arith.constant 0 : index
    %c0_2 = arith.constant 0 : index
    %1 = vector.load %arg2[%c0_1, %c0_2] : memref<32x512xf32, #tpu.memory_space<vmem>>, vector<32x512xf32>
    %cst = arith.constant dense<0.000000e+00> : vector<64x512xf32>
    %2 = tpu.matmul %0, %1, %cst {dimension_numbers = #tpu.dot_dimension_numbers<[1], [0], [0], [1], [0, 0, 1, 1], [], []>} : vector<64x32xf32>, vector<32x512xf32>, vector<64x512xf32> -> vector<64x512xf32>
    %c0_3 = arith.constant 0 : index
    %c0_4 = arith.constant 0 : index
    %3 = vector.load %arg3[%c0_3, %c0_4] : memref<512x16xf32, #tpu.memory_space<vmem>>, vector<512x16xf32>
    %cst_5 = arith.constant dense<0.000000e+00> : vector<64x16xf32>
    %4 = tpu.matmul %2, %3, %cst_5 {dimension_numbers = #tpu.dot_dimension_numbers<[1], [0], [0], [1], [0, 0, 1, 1], [], []>} : vector<64x512xf32>, vector<512x16xf32>, vector<64x16xf32> -> vector<64x16xf32>
    %5 = arith.mulf %2, %2 : vector<64x512xf32>
    %cst_6 = arith.constant dense<0.000000e+00> : vector<64x16xf32>
    %6 = tpu.matmul %5, %3, %cst_6 {dimension_numbers = #tpu.dot_dimension_numbers<[1], [0], [0], [1], [0, 0, 1, 1], [], []>} : vector<64x512xf32>, vector<512x16xf32>, vector<64x16xf32> -> vector<64x16xf32>
    %7 = arith.mulf %4, %4 : vector<64x16xf32>
    %8 = arith.subf %6, %7 : vector<64x16xf32>
    %cst_7 = arith.constant 0.000000e+00 : f32
    %9 = vector.broadcast %cst_7 : f32 to vector<64x16xf32>
    %10 = arith.maximumf %8, %9 : vector<64x16xf32>
    %cst_8 = arith.constant 9.99999974E-6 : f32
    %11 = vector.broadcast %cst_8 : f32 to vector<64x16xf32>
    %12 = arith.addf %10, %11 : vector<64x16xf32>
    %13 = math.rsqrt %12 : vector<64x16xf32>
    %14 = arith.mulf %4, %13 : vector<64x16xf32>
    %c0_9 = arith.constant 0 : index
    %c0_10 = arith.constant 0 : index
    %15 = vector.load %arg4[%c0_9, %c0_10] : memref<16x512xf32, #tpu.memory_space<vmem>>, vector<16x128xf32>
    %cst_11 = arith.constant dense<0.000000e+00> : vector<64x128xf32>
    %16 = tpu.matmul %13, %15, %cst_11 {dimension_numbers = #tpu.dot_dimension_numbers<[1], [0], [0], [1], [0, 0, 1, 1], [], []>} : vector<64x16xf32>, vector<16x128xf32>, vector<64x128xf32> -> vector<64x128xf32>
    %cst_12 = arith.constant dense<0.000000e+00> : vector<64x128xf32>
    %17 = tpu.matmul %14, %15, %cst_12 {dimension_numbers = #tpu.dot_dimension_numbers<[1], [0], [0], [1], [0, 0, 1, 1], [], []>} : vector<64x16xf32>, vector<16x128xf32>, vector<64x128xf32> -> vector<64x128xf32>
    %18 = vector.extract_strided_slice %2 {offsets = [0, 0], sizes = [64, 128], strides = [1, 1]} : vector<64x512xf32> to vector<64x128xf32>
    %19 = arith.mulf %18, %16 : vector<64x128xf32>
    %20 = arith.subf %19, %17 : vector<64x128xf32>
    %c0_13 = arith.constant 0 : index
    %c0_14 = arith.constant 0 : index
    %21 = vector.load %arg5[%c0_13, %c0_14] : memref<1x512xf32, #tpu.memory_space<vmem>>, vector<1x128xf32>
    %22 = vector.broadcast %21 : vector<1x128xf32> to vector<64x128xf32>
    %23 = arith.addf %20, %22 : vector<64x128xf32>
    %24 = vector.shape_cast %23 : vector<64x128xf32> to vector<8x8x128xf32>
    %c0_15 = arith.constant 0 : index
    %c0_16 = arith.constant 0 : index
    %c0_17 = arith.constant 0 : index
    %c0_18 = arith.constant 0 : index
    %25 = vector.load %arg6[%c0_15, %c0_16, %c0_17, %c0_18] : memref<8x4x8x128xf32, #tpu.memory_space<vmem>>, vector<8x1x8x128xf32>
    %26 = vector.shape_cast %25 : vector<8x1x8x128xf32> to vector<8x8x128xf32>
    %27 = vector.shape_cast %24 : vector<8x8x128xf32> to vector<8x1x8x128xf32>
    tpu.vector_store %arg6[%c0_15, %c0_16, %c0_17, %c0_18], %27 {strides = array<i32>} : memref<8x4x8x128xf32, #tpu.memory_space<vmem>>, vector<8x1x8x128xf32>,
    %c0_19 = arith.constant 0 : index
    %c128 = arith.constant 128 : index
    %28 = vector.load %arg4[%c0_19, %c128] : memref<16x512xf32, #tpu.memory_space<vmem>>, vector<16x128xf32>
    %cst_20 = arith.constant dense<0.000000e+00> : vector<64x128xf32>
    %29 = tpu.matmul %13, %28, %cst_20 {dimension_numbers = #tpu.dot_dimension_numbers<[1], [0], [0], [1], [0, 0, 1, 1], [], []>} : vector<64x16xf32>, vector<16x128xf32>, vector<64x128xf32> -> vector<64x128xf32>
    %cst_21 = arith.constant dense<0.000000e+00> : vector<64x128xf32>
    %30 = tpu.matmul %14, %28, %cst_21 {dimension_numbers = #tpu.dot_dimension_numbers<[1], [0], [0], [1], [0, 0, 1, 1], [], []>} : vector<64x16xf32>, vector<16x128xf32>, vector<64x128xf32> -> vector<64x128xf32>
    %31 = vector.extract_strided_slice %2 {offsets = [0, 128], sizes = [64, 128], strides = [1, 1]} : vector<64x512xf32> to vector<64x128xf32>
    %32 = arith.mulf %31, %29 : vector<64x128xf32>
    %33 = arith.subf %32, %30 : vector<64x128xf32>
    %c0_22 = arith.constant 0 : index
    %c128_23 = arith.constant 128 : index
    %34 = vector.load %arg5[%c0_22, %c128_23] : memref<1x512xf32, #tpu.memory_space<vmem>>, vector<1x128xf32>
    %35 = vector.broadcast %34 : vector<1x128xf32> to vector<64x128xf32>
    %36 = arith.addf %33, %35 : vector<64x128xf32>
    %37 = vector.shape_cast %36 : vector<64x128xf32> to vector<8x8x128xf32>
    %c0_24 = arith.constant 0 : index
    %c1 = arith.constant 1 : index
    %c0_25 = arith.constant 0 : index
    %c0_26 = arith.constant 0 : index
    %38 = vector.load %arg6[%c0_24, %c1, %c0_25, %c0_26] : memref<8x4x8x128xf32, #tpu.memory_space<vmem>>, vector<8x1x8x128xf32>
    %39 = vector.shape_cast %38 : vector<8x1x8x128xf32> to vector<8x8x128xf32>
    %40 = vector.shape_cast %37 : vector<8x8x128xf32> to vector<8x1x8x128xf32>
    tpu.vector_store %arg6[%c0_24, %c1, %c0_25, %c0_26], %40 {strides = array<i32>} : memref<8x4x8x128xf32, #tpu.memory_space<vmem>>, vector<8x1x8x128xf32>,
    %c0_27 = arith.constant 0 : index
    %c256 = arith.constant 256 : index
    %41 = vector.load %arg4[%c0_27, %c256] : memref<16x512xf32, #tpu.memory_space<vmem>>, vector<16x128xf32>
    %cst_28 = arith.constant dense<0.000000e+00> : vector<64x128xf32>
    %42 = tpu.matmul %13, %41, %cst_28 {dimension_numbers = #tpu.dot_dimension_numbers<[1], [0], [0], [1], [0, 0, 1, 1], [], []>} : vector<64x16xf32>, vector<16x128xf32>, vector<64x128xf32> -> vector<64x128xf32>
    %cst_29 = arith.constant dense<0.000000e+00> : vector<64x128xf32>
    %43 = tpu.matmul %14, %41, %cst_29 {dimension_numbers = #tpu.dot_dimension_numbers<[1], [0], [0], [1], [0, 0, 1, 1], [], []>} : vector<64x16xf32>, vector<16x128xf32>, vector<64x128xf32> -> vector<64x128xf32>
    %44 = vector.extract_strided_slice %2 {offsets = [0, 256], sizes = [64, 128], strides = [1, 1]} : vector<64x512xf32> to vector<64x128xf32>
    %45 = arith.mulf %44, %42 : vector<64x128xf32>
    %46 = arith.subf %45, %43 : vector<64x128xf32>
    %c0_30 = arith.constant 0 : index
    %c256_31 = arith.constant 256 : index
    %47 = vector.load %arg5[%c0_30, %c256_31] : memref<1x512xf32, #tpu.memory_space<vmem>>, vector<1x128xf32>
    %48 = vector.broadcast %47 : vector<1x128xf32> to vector<64x128xf32>
    %49 = arith.addf %46, %48 : vector<64x128xf32>
    %50 = vector.shape_cast %49 : vector<64x128xf32> to vector<8x8x128xf32>
    %c0_32 = arith.constant 0 : index
    %c2 = arith.constant 2 : index
    %c0_33 = arith.constant 0 : index
    %c0_34 = arith.constant 0 : index
    %51 = vector.load %arg6[%c0_32, %c2, %c0_33, %c0_34] : memref<8x4x8x128xf32, #tpu.memory_space<vmem>>, vector<8x1x8x128xf32>
    %52 = vector.shape_cast %51 : vector<8x1x8x128xf32> to vector<8x8x128xf32>
    %53 = vector.shape_cast %50 : vector<8x8x128xf32> to vector<8x1x8x128xf32>
    tpu.vector_store %arg6[%c0_32, %c2, %c0_33, %c0_34], %53 {strides = array<i32>} : memref<8x4x8x128xf32, #tpu.memory_space<vmem>>, vector<8x1x8x128xf32>,
    %c0_35 = arith.constant 0 : index
    %c384 = arith.constant 384 : index
    %54 = vector.load %arg4[%c0_35, %c384] : memref<16x512xf32, #tpu.memory_space<vmem>>, vector<16x128xf32>
    %cst_36 = arith.constant dense<0.000000e+00> : vector<64x128xf32>
    %55 = tpu.matmul %13, %54, %cst_36 {dimension_numbers = #tpu.dot_dimension_numbers<[1], [0], [0], [1], [0, 0, 1, 1], [], []>} : vector<64x16xf32>, vector<16x128xf32>, vector<64x128xf32> -> vector<64x128xf32>
    %cst_37 = arith.constant dense<0.000000e+00> : vector<64x128xf32>
    %56 = tpu.matmul %14, %54, %cst_37 {dimension_numbers = #tpu.dot_dimension_numbers<[1], [0], [0], [1], [0, 0, 1, 1], [], []>} : vector<64x16xf32>, vector<16x128xf32>, vector<64x128xf32> -> vector<64x128xf32>
    %57 = vector.extract_strided_slice %2 {offsets = [0, 384], sizes = [64, 128], strides = [1, 1]} : vector<64x512xf32> to vector<64x128xf32>
    %58 = arith.mulf %57, %55 : vector<64x128xf32>
    %59 = arith.subf %58, %56 : vector<64x128xf32>
    %c0_38 = arith.constant 0 : index
    %c384_39 = arith.constant 384 : index
    %60 = vector.load %arg5[%c0_38, %c384_39] : memref<1x512xf32, #tpu.memory_space<vmem>>, vector<1x128xf32>
    %61 = vector.broadcast %60 : vector<1x128xf32> to vector<64x128xf32>
    %62 = arith.addf %59, %61 : vector<64x128xf32>
    %63 = vector.shape_cast %62 : vector<64x128xf32> to vector<8x8x128xf32>
    %c0_40 = arith.constant 0 : index
    %c3 = arith.constant 3 : index
    %c0_41 = arith.constant 0 : index
    %c0_42 = arith.constant 0 : index
    %64 = vector.load %arg6[%c0_40, %c3, %c0_41, %c0_42] : memref<8x4x8x128xf32, #tpu.memory_space<vmem>>, vector<8x1x8x128xf32>
    %65 = vector.shape_cast %64 : vector<8x1x8x128xf32> to vector<8x8x128xf32>
    %66 = vector.shape_cast %63 : vector<8x8x128xf32> to vector<8x1x8x128xf32>
    tpu.vector_store %arg6[%c0_40, %c3, %c0_41, %c0_42], %66 {strides = array<i32>} : memref<8x4x8x128xf32, #tpu.memory_space<vmem>>, vector<8x1x8x128xf32>,
    return
  }
  func.func @transform_0(%arg0: i32) -> (i32, i32) {
    %c0_i32 = arith.constant 0 : i32
    %c0_i32_0 = arith.constant 0 : i32
    return %arg0, %c0_i32 : i32, i32
  }
  func.func @transform_1(%arg0: i32) -> (i32, i32) {
    %c0_i32 = arith.constant 0 : i32
    %c0_i32_0 = arith.constant 0 : i32
    %c0_i32_1 = arith.constant 0 : i32
    return %c0_i32, %c0_i32_0 : i32, i32
  }
  func.func @transform_2(%arg0: i32) -> (i32, i32) {
    %c0_i32 = arith.constant 0 : i32
    %c0_i32_0 = arith.constant 0 : i32
    %c0_i32_1 = arith.constant 0 : i32
    return %c0_i32, %c0_i32_0 : i32, i32
  }
  func.func @transform_3(%arg0: i32) -> (i32, i32) {
    %c0_i32 = arith.constant 0 : i32
    %c0_i32_0 = arith.constant 0 : i32
    %c0_i32_1 = arith.constant 0 : i32
    return %c0_i32, %c0_i32_0 : i32, i32
  }
  func.func @transform_4(%arg0: i32) -> (i32, i32) {
    %c0_i32 = arith.constant 0 : i32
    %c0_i32_0 = arith.constant 0 : i32
    %c0_i32_1 = arith.constant 0 : i32
    return %c0_i32, %c0_i32_0 : i32, i32
  }
  func.func @transform_5(%arg0: i32) -> (i32, i32, i32, i32) {
    %c0_i32 = arith.constant 0 : i32
    %c0_i32_0 = arith.constant 0 : i32
    %c0_i32_1 = arith.constant 0 : i32
    %c0_i32_2 = arith.constant 0 : i32
    return %arg0, %c0_i32, %c0_i32_0, %c0_i32_1 : i32, i32, i32, i32
  }
}

</mosaic_0001>

<llo_original>
// kernel: tpu_custom_call.1
$region0: #{tpu_custom_call.1}
  #allocation0 [shape = 'u32[]', space=smem, size = 0x4, offset = 0x4, fixed_abs, tag = 'smem constant byte address 0x4 - core index']
  #allocation1 [shape = 'u32[144,128]{1,0:T(1,128)}', space=vmem, size = 0x12000, scoped, tag = 'internal scratch']
  %s0 = inlined_call_operand.vmem [shape: f32[128,32], index: 0, kind: input, shape index: {}]
  %s1 = inlined_call_operand.vmem [shape: f32[32,512], index: 1, kind: input, shape index: {}]
  %s2 = inlined_call_operand.vmem [shape: f32[512,16], index: 2, kind: input, shape index: {}]
  %s3 = inlined_call_operand.vmem [shape: f32[16,512], index: 3, kind: input, shape index: {}]
  %s4 = inlined_call_operand.vmem [shape: f32[1,512], index: 4, kind: input, shape index: {}]
  %s5 = inlined_call_operand.hbm [shape: f32[16,4,8,128], index: 5, kind: output, shape index: {}]
  %s6 = sld [smem:[#allocation0]]
  $region53: #{tpu_custom_call.1} parent=0
    _
  %s8 = ssub.s32 1, %s6
  %s9 = scalar_select 0, %s8, %s6
  $region1: #{tpu_custom_call.1} parent=0
    #allocation2 [shape = 'u8[262144]{0}', space=vmem, size = 0x40000, scoped, tag = 'output window, operand 0']
    #allocation3 [shape = 's32[2]{0}', space=sflag, size = 0x8, scoped, tag = 'scoped memory for tpu_custom_call.1']
    %10 = vsyncpa [#allocation3], 0
    %s11 = scalar_lea.sflag [#allocation3], 1
    %12 = vsyncpa %s11, 0
    loop: start=0, step=1, limit=4
    $region2: #{tpu_custom_call.1} parent=1 // loop_pre_header
      _
    $region3: #{tpu_custom_call.1} parent=1 // loop_header
      %s14 = sphi 0, %s18
      %p15 = scmp.ge.s32.totalorder %s14, 4
      %s24 = sphi 0, %s26
      %s27 = sphi 0, %s24
      %s28 = sphi 0, %s27
      %s44 = sphi 0, %s28
      %s48 = sphi 0, %s48
      %s50 = sphi 0, %s48
      %s51 = sphi 0, %s50
      %s65 = sphi 0, %s51
      %s69 = sphi 0, %s69
      %s71 = sphi 0, %s69
      %s72 = sphi 0, %s71
      %s86 = sphi 0, %s72
      %s90 = sphi 0, %s90
      %s92 = sphi 0, %s90
      %s93 = sphi 0, %s92
      %s107 = sphi 0, %s93
      %s111 = sphi 0, %s111
      %s113 = sphi 0, %s111
      %s114 = sphi 0, %s113
      %s128 = sphi 0, %s114
      %s134 = sphi 0, %s136
      %s137 = sphi 0, %s134
      %s138 = sphi 0, %s137
      %s154 = sphi 0, %s138
    $region4: #{tpu_custom_call.1} parent=1 // loop_header_branch
      %17 = sbr.rel (%p15) target = $region8
    $region5: #{tpu_custom_call.1} parent=1 // loop_body
      %s19 = ssub.s32 %s14, 1
      %s20 = ssub.s32 %s14, 2
      %s21 = sadd.s32 %s14, 1
      %s22 = ssub.s32 %s14, %s21
      %p23 = scmp.eq.s32.totalorder %s22, 0
      %s25 = sadd.s32 %s24, 1
      %s26 = scalar_select %p23, %s24, %s25
      %p29 = pneg %p23
      %p30 = scmp.eq.s32.totalorder %s14, 1
      %p31 = por %p29, %p30
      %p32 = scmp.ne.s32.totalorder %s24, %s27
      %p33 = scmp.eq.s32.totalorder %s14, 0
      %p34 = por %p32, %p33
      %p35 = scmp.ne.s32.totalorder %s24, %s27
      %p36 = scmp.eq.s32.totalorder %s19, 1
      %p37 = por %p35, %p36
      %p38 = scmp.ne.s32.totalorder %s27, %s28
      %p39 = scmp.eq.s32.totalorder %s19, 0
      %p40 = por %p38, %p39
      %p41 = scmp.ne.s32.totalorder %s27, %s28
      %p42 = scmp.eq.s32.totalorder %s20, 1
      %p43 = por %p41, %p42
      %p45 = scmp.ne.s32.totalorder %s28, %s44
      %p46 = scmp.eq.s32.totalorder %s20, 0
      %p47 = por %p45, %p46
      %s49 = sadd.s32 %s48, 1
      %p52 = scmp.eq.s32.totalorder %s14, 1
      %p53 = scmp.ne.s32.totalorder %s48, %s50
      %p54 = scmp.eq.s32.totalorder %s14, 0
      %p55 = por %p53, %p54
      %p56 = scmp.ne.s32.totalorder %s48, %s50
      %p57 = scmp.eq.s32.totalorder %s19, 1
      %p58 = por %p56, %p57
      %p59 = scmp.ne.s32.totalorder %s50, %s51
      %p60 = scmp.eq.s32.totalorder %s19, 0
      %p61 = por %p59, %p60
      %p62 = scmp.ne.s32.totalorder %s50, %s51
      %p63 = scmp.eq.s32.totalorder %s20, 1
      %p64 = por %p62, %p63
      %p66 = scmp.ne.s32.totalorder %s51, %s65
      %p67 = scmp.eq.s32.totalorder %s20, 0
      %p68 = por %p66, %p67
      %s70 = sadd.s32 %s69, 1
      %p73 = scmp.eq.s32.totalorder %s14, 1
      %p74 = scmp.ne.s32.totalorder %s69, %s71
      %p75 = scmp.eq.s32.totalorder %s14, 0
      %p76 = por %p74, %p75
      %p77 = scmp.ne.s32.totalorder %s69, %s71
      %p78 = scmp.eq.s32.totalorder %s19, 1
      %p79 = por %p77, %p78
      %p80 = scmp.ne.s32.totalorder %s71, %s72
      %p81 = scmp.eq.s32.totalorder %s19, 0
      %p82 = por %p80, %p81
      %p83 = scmp.ne.s32.totalorder %s71, %s72
      %p84 = scmp.eq.s32.totalorder %s20, 1
      %p85 = por %p83, %p84
      %p87 = scmp.ne.s32.totalorder %s72, %s86
      %p88 = scmp.eq.s32.totalorder %s20, 0
      %p89 = por %p87, %p88
      %s91 = sadd.s32 %s90, 1
      %p94 = scmp.eq.s32.totalorder %s14, 1
      %p95 = scmp.ne.s32.totalorder %s90, %s92
      %p96 = scmp.eq.s32.totalorder %s14, 0
      %p97 = por %p95, %p96
      %p98 = scmp.ne.s32.totalorder %s90, %s92
      %p99 = scmp.eq.s32.totalorder %s19, 1
      %p100 = por %p98, %p99
      %p101 = scmp.ne.s32.totalorder %s92, %s93
      %p102 = scmp.eq.s32.totalorder %s19, 0
      %p103 = por %p101, %p102
      %p104 = scmp.ne.s32.totalorder %s92, %s93
      %p105 = scmp.eq.s32.totalorder %s20, 1
      %p106 = por %p104, %p105
      %p108 = scmp.ne.s32.totalorder %s93, %s107
      %p109 = scmp.eq.s32.totalorder %s20, 0
      %p110 = por %p108, %p109
      %s112 = sadd.s32 %s111, 1
      %p115 = scmp.eq.s32.totalorder %s14, 1
      %p116 = scmp.ne.s32.totalorder %s111, %s113
      %p117 = scmp.eq.s32.totalorder %s14, 0
      %p118 = por %p116, %p117
      %p119 = scmp.ne.s32.totalorder %s111, %s113
      %p120 = scmp.eq.s32.totalorder %s19, 1
      %p121 = por %p119, %p120
      %p122 = scmp.ne.s32.totalorder %s113, %s114
      %p123 = scmp.eq.s32.totalorder %s19, 0
      %p124 = por %p122, %p123
      %p125 = scmp.ne.s32.totalorder %s113, %s114
      %p126 = scmp.eq.s32.totalorder %s20, 1
      %p127 = por %p125, %p126
      %p129 = scmp.ne.s32.totalorder %s114, %s128
      %p130 = scmp.eq.s32.totalorder %s20, 0
      %p131 = por %p129, %p130
      %s132 = ssub.s32 %s14, %s21
      %p133 = scmp.eq.s32.totalorder %s132, 0
      %s135 = sadd.s32 %s134, 1
      %s136 = scalar_select %p133, %s134, %s135
      %p139 = pneg %p133
      %p140 = scmp.eq.s32.totalorder %s14, 1
      %p141 = por %p139, %p140
      %p142 = scmp.ne.s32.totalorder %s134, %s137
      %p143 = scmp.eq.s32.totalorder %s14, 0
      %p144 = por %p142, %p143
      %p145 = scmp.ne.s32.totalorder %s134, %s137
      %p146 = scmp.eq.s32.totalorder %s19, 1
      %p147 = por %p145, %p146
      %p148 = scmp.ne.s32.totalorder %s137, %s138
      %p149 = scmp.eq.s32.totalorder %s19, 0
      %p150 = por %p148, %p149
      %p151 = scmp.ne.s32.totalorder %s137, %s138
      %p152 = scmp.eq.s32.totalorder %s20, 1
      %p153 = por %p151, %p152
      %p155 = scmp.ne.s32.totalorder %s138, %s154
      %p156 = scmp.eq.s32.totalorder %s20, 0
      %p157 = por %p155, %p156
      %p158 = scmp.le.s32.totalorder 1, %s14
      %p159 = scmp.lt.s32.totalorder %s14, 3
      %p160 = pnand %p158, %p159
      %p161 = pneg %p160
      // Predicated region
      $region9: #{tpu_custom_call.1} parent=5 // pred_check
        _
      $region10: #{tpu_custom_call.1} parent=5 // pred_check_branch
        %163 = sbr.rel (%p160) target = $region12
      $region11: #{tpu_custom_call.1} parent=5 // pred_region
        %s164 = ssub.s32 %s14, 1
        // Predicated region
        $region13: #{tpu_custom_call.1} parent=11 // pred_check
          %p165 = pneg %p61
        $region14: #{tpu_custom_call.1} parent=11 // pred_check_branch
          %167 = sbr.rel (%p165) target = $region16
        $region15: #{tpu_custom_call.1} parent=11 // pred_region
          _
        $region16: #{tpu_custom_call.1} parent=11 // pred_fallthru
          _
        // Predicated region
        $region17: #{tpu_custom_call.1} parent=11 // pred_check
          %p168 = pneg %p82
        $region18: #{tpu_custom_call.1} parent=11 // pred_check_branch
          %170 = sbr.rel (%p168) target = $region20
        $region19: #{tpu_custom_call.1} parent=11 // pred_region
          _
        $region20: #{tpu_custom_call.1} parent=11 // pred_fallthru
          _
        // Predicated region
        $region21: #{tpu_custom_call.1} parent=11 // pred_check
          %p171 = pneg %p103
        $region22: #{tpu_custom_call.1} parent=11 // pred_check_branch
          %173 = sbr.rel (%p171) target = $region24
        $region23: #{tpu_custom_call.1} parent=11 // pred_region
          _
        $region24: #{tpu_custom_call.1} parent=11 // pred_fallthru
          _
        // Predicated region
        $region25: #{tpu_custom_call.1} parent=11 // pred_check
          %p174 = pneg %p124
        $region26: #{tpu_custom_call.1} parent=11 // pred_check_branch
          %176 = sbr.rel (%p174) target = $region28
        $region27: #{tpu_custom_call.1} parent=11 // pred_region
          _
        $region28: #{tpu_custom_call.1} parent=11 // pred_fallthru
          _
      $region12: #{tpu_custom_call.1} parent=5 // pred_fallthru
        _
      %p177 = scmp.lt.s32.totalorder %s14, 2
      // Predicated region
      $region29: #{tpu_custom_call.1} parent=5 // pred_check
        %p178 = pneg %p177
      $region30: #{tpu_custom_call.1} parent=5 // pred_check_branch
        %180 = sbr.rel (%p178) target = $region32
      $region31: #{tpu_custom_call.1} parent=5 // pred_region
        // Predicated region
        $region33: #{tpu_custom_call.1} parent=31 // pred_check
          %p181 = pneg %p34
        $region34: #{tpu_custom_call.1} parent=31 // pred_check_branch
          %183 = sbr.rel (%p181) target = $region36
        $region35: #{tpu_custom_call.1} parent=31 // pred_region
          %s184 = smul.u32 8, %s14
          %p185 = scmp.lt.s32.totalorder %s184, 15
          %s186 = scalar_select %p185, %s184, 15
          %s187 = smul.addr %s186, 8
          %s188 = scalar_lea.vmem %s0, %s187
          %s189 = smul.u32 8, %s14
        $region36: #{tpu_custom_call.1} parent=31 // pred_fallthru
          _
      $region32: #{tpu_custom_call.1} parent=5 // pred_fallthru
        _
      %p190 = scmp.le.s32.totalorder 1, %s14
      %p191 = scmp.lt.s32.totalorder %s14, 3
      %p192 = pnand %p190, %p191
      %p193 = pneg %p192
      // Predicated region
      $region37: #{tpu_custom_call.1} parent=5 // pred_check
        _
      $region38: #{tpu_custom_call.1} parent=5 // pred_check_branch
        %195 = sbr.rel (%p192) target = $region40
      $region39: #{tpu_custom_call.1} parent=5 // pred_region
        %s196 = ssub.s32 %s14, 1
        %s197 = smul.u32 8, %s19
        %p198 = scmp.lt.s32.totalorder %s197, 15
        %s199 = scalar_select %p198, %s197, 15
        %s200 = smul.addr %s199, 8
        %s201 = scalar_lea.vmem %s0, %s200
        %p202 = pneg %p40
        %p203 = pneg %p37
        %p204 = pneg %p61
        %p205 = pneg %p58
        %p206 = pneg %p82
        %p207 = pneg %p79
        %p208 = pneg %p103
        %p209 = pneg %p100
        %p210 = pneg %p124
        %p211 = pneg %p121
        %p212 = pneg %p150
        %p213 = pneg %p147
        %s214 = sand.u32 %s137, 1
        %s215 = scalar_lea.sflag [#allocation3], %s214
        %s216 = sand.u32 %s137, 1
        %s217 = smul.addr %s216, 256
        %s218 = scalar_lea.vmem [#allocation2], %s217
        %s219 = smul.u32 8, %s19
        %p220 = scmp.lt.s32.totalorder %s219, 15
        %s221 = scalar_select %p220, %s219, 15
        %s222 = smul.addr %s221, 8
        %s223 = scalar_lea.vmem %s0, %s222
        %s224 = smul.u32 8, %s19
        %s225 = smul.u32 8, %s19
        %v226 = vld [vmem:[%s223] sm:$0xff]
        %v227 = vld [vmem:[%s223 + $0x8] sm:$0xff]
        %v228 = vld [vmem:[%s223 + $0x10] sm:$0xff]
        %v229 = vld [vmem:[%s223 + $0x18] sm:$0xff]
        %v230 = vld [vmem:[%s223 + $0x20] sm:$0xff]
        %v231 = vld [vmem:[%s223 + $0x28] sm:$0xff]
        %v232 = vld [vmem:[%s223 + $0x30] sm:$0xff]
        %v233 = vld [vmem:[%s223 + $0x38] sm:$0xff]
        %v234 = vld [vmem:[%s1] sm:$0xff]
        %v235 = vld [vmem:[%s1 + $0x8] sm:$0xff]
        %v236 = vld [vmem:[%s1 + $0x10] sm:$0xff]
        %v237 = vld [vmem:[%s1 + $0x18] sm:$0xff]
        %v238 = vld [vmem:[%s1 + $0x20] sm:$0xff]
        %v239 = vld [vmem:[%s1 + $0x28] sm:$0xff]
        %v240 = vld [vmem:[%s1 + $0x30] sm:$0xff]
        %v241 = vld [vmem:[%s1 + $0x38] sm:$0xff]
        %v242 = vld [vmem:[%s1 + $0x40] sm:$0xff]
        %v243 = vld [vmem:[%s1 + $0x48] sm:$0xff]
        %v244 = vld [vmem:[%s1 + $0x50] sm:$0xff]
        %v245 = vld [vmem:[%s1 + $0x58] sm:$0xff]
        %v246 = vld [vmem:[%s1 + $0x60] sm:$0xff]
        %v247 = vld [vmem:[%s1 + $0x68] sm:$0xff]
        %v248 = vld [vmem:[%s1 + $0x70] sm:$0xff]
        %v249 = vld [vmem:[%s1 + $0x78] sm:$0xff]
        %vm250 = vcmask 261120
        %v252 = vsel %vm250, %v226, 0
        %v255 = vsel %vm250, %v227, 0
        %v258 = vsel %vm250, %v228, 0
        %v261 = vsel %vm250, %v229, 0
        %v264 = vsel %vm250, %v230, 0
        %v267 = vsel %vm250, %v231, 0
        %v270 = vsel %vm250, %v232, 0
        %v273 = vsel %vm250, %v233, 0
        %275 = vmatprep.subr.mxu0 %v235
        %276 = vmatpush1.msra.mxu0 %v234
        %277 = vmatprep.subr.mxu0 %v239
        %278 = vmatpush1.msra.mxu0 %v238
        %279 = vmatprep.subr.mxu0 %v243
        %280 = vmatpush1.msra.mxu0 %v242
        %281 = vmatprep.subr.mxu0 %v247
        %282 = vmatpush1.msra.mxu0 %v246
        %283 = vmatprep.subr.mxu0 0.0
        %284 = vmatpush1.msra.mxu0 0.0
        %285 = vmatprep.subr.mxu0 0.0
        %286 = vmatpush1.msra.mxu0 0.0
        %287 = vmatprep.subr.mxu0 0.0
        %288 = vmatpush1.msra.mxu0 0.0
        %289 = vmatprep.subr.mxu0 0.0
        %290 = vmatpush1.msra.mxu0 0.0
        %291 = vmatprep.subr.mxu0 0.0
        %292 = vmatpush1.msra.mxu0 0.0
        %293 = vmatprep.subr.mxu0 0.0
        %294 = vmatpush1.msra.mxu0 0.0
        %295 = vmatprep.subr.mxu0 0.0
        %296 = vmatpush1.msra.mxu0 0.0
        %297 = vmatprep.subr.mxu0 0.0
        %298 = vmatpush1.msra.mxu0 0.0
        %299 = vmatprep.subr.mxu0 0.0
        %300 = vmatpush1.msra.mxu0 0.0
        %301 = vmatprep.subr.mxu0 0.0
        %302 = vmatpush1.msra.mxu0 0.0
        %303 = vmatprep.subr.mxu0 0.0
        %304 = vmatpush1.msra.mxu0 0.0
        %305 = vmatprep.subr.mxu0 0.0
        %306 = vmatpush1.msra.mxu0 0.0
        %307 = vmatprep.subr.mxu0 0.0
        %308 = vmatpush1.msra.mxu0 0.0
        %309 = vmatprep.subr.mxu0 0.0
        %310 = vmatpush1.msra.mxu0 0.0
        %311 = vmatprep.subr.mxu0 0.0
        %312 = vmatpush1.msra.mxu0 0.0
        %313 = vmatprep.subr.mxu0 0.0
        %314 = vmatpush1.msra.mxu0 0.0
        %315 = vmatprep.subr.mxu0 0.0
        %316 = vmatpush1.msra.mxu0 0.0
        %317 = vmatprep.subr.mxu0 0.0
        %318 = vmatpush1.msra.mxu0 0.0
        %319 = vmatprep.subr.mxu0 0.0
        %320 = vmatpush1.msra.mxu0 0.0
        %321 = vmatprep.subr.mxu0 0.0
        %322 = vmatpush1.msra.mxu0 0.0
        %323 = vmatprep.subr.mxu0 0.0
        %324 = vmatpush1.msra.mxu0 0.0
        %325 = vmatprep.subr.mxu0 0.0
        %326 = vmatpush1.msra.mxu0 0.0
        %327 = vmatprep.subr.mxu0 0.0
        %328 = vmatpush1.msra.mxu0 0.0
        %329 = vmatprep.subr.mxu0 0.0
        %330 = vmatpush1.msra.mxu0 0.0
        %331 = vmatprep.subr.mxu0 0.0
        %332 = vmatpush1.msra.mxu0 0.0
        %333 = vmatprep.subr.mxu0 0.0
        %334 = vmatpush1.msra.mxu0 0.0
        %335 = vmatprep.subr.mxu0 0.0
        %336 = vmatpush1.msra.mxu0 0.0
        %337 = vmatprep.subr.mxu0 0.0
        %338 = vmatpush1.msra.mxu0 0.0
        %339 = vmatprep.mubr.f32.mxu0 0.0
        %340 = vmatmul.mubr.f32.gmra.mrb[0].mxu0 %v252
        %v341 = vpop.f32.mrb[0].mxu0
        %v342 = vadd.f32 0.0, %v341
        %v343 = vpop.f32.mrb[0].mxu0
        %v344 = vadd.f32 0.0, %v343
        %345 = vmatprep.mubr.f32.mxu0 0.0
        %346 = vmatmul.mubr.f32.gmra.mrb[0].mxu0 %v255
        %v347 = vpop.f32.mrb[0].mxu0
        %v348 = vadd.f32 0.0, %v347
        %v349 = vpop.f32.mrb[0].mxu0
        %v350 = vadd.f32 0.0, %v349
        %351 = vmatprep.mubr.f32.mxu0 0.0
        %352 = vmatmul.mubr.f32.gmra.mrb[0].mxu0 %v258
        %v353 = vpop.f32.mrb[0].mxu0
        %v354 = vadd.f32 0.0, %v353
        %v355 = vpop.f32.mrb[0].mxu0
        %v356 = vadd.f32 0.0, %v355
        %357 = vmatprep.mubr.f32.mxu0 0.0
        %358 = vmatmul.mubr.f32.gmra.mrb[0].mxu0 %v261
        %v359 = vpop.f32.mrb[0].mxu0
        %v360 = vadd.f32 0.0, %v359
        %v361 = vpop.f32.mrb[0].mxu0
        %v362 = vadd.f32 0.0, %v361
        %363 = vmatprep.mubr.f32.mxu0 0.0
        %364 = vmatmul.mubr.f32.gmra.mrb[0].mxu0 %v264
        %v365 = vpop.f32.mrb[0].mxu0
        %v366 = vadd.f32 0.0, %v365
        %v367 = vpop.f32.mrb[0].mxu0
        %v368 = vadd.f32 0.0, %v367
        %369 = vmatprep.mubr.f32.mxu0 0.0
        %370 = vmatmul.mubr.f32.gmra.mrb[0].mxu0 %v267
        %v371 = vpop.f32.mrb[0].mxu0
        %v372 = vadd.f32 0.0, %v371
        %v373 = vpop.f32.mrb[0].mxu0
        %v374 = vadd.f32 0.0, %v373
        %375 = vmatprep.mubr.f32.mxu0 0.0
        %376 = vmatmul.mubr.f32.gmra.mrb[0].mxu0 %v270
        %v377 = vpop.f32.mrb[0].mxu0
        %v378 = vadd.f32 0.0, %v377
        %v379 = vpop.f32.mrb[0].mxu0
        %v380 = vadd.f32 0.0, %v379
        %381 = vmatprep.mubr.f32.mxu0 0.0
        %382 = vmatmul.mubr.f32.gmra.mrb[0].mxu0 %v273
        %v383 = vpop.f32.mrb[0].mxu0
        %v384 = vadd.f32 0.0, %v383
        %v385 = vpop.f32.mrb[0].mxu0
        %v386 = vadd.f32 0.0, %v385
        %387 = vdwg.mxu0
        %388 = vmatprep.subr.mxu0 %v237
        %389 = vmatpush1.msra.mxu0 %v236
        %390 = vmatprep.subr.mxu0 %v241
        %391 = vmatpush1.msra.mxu0 %v240
        %392 = vmatprep.subr.mxu0 %v245
        %393 = vmatpush1.msra.mxu0 %v244
        %394 = vmatprep.subr.mxu0 %v249
        %395 = vmatpush1.msra.mxu0 %v248
        %396 = vmatprep.subr.mxu0 0.0
        %397 = vmatpush1.msra.mxu0 0.0
        %398 = vmatprep.subr.mxu0 0.0
        %399 = vmatpush1.msra.mxu0 0.0
        %400 = vmatprep.subr.mxu0 0.0
        %401 = vmatpush1.msra.mxu0 0.0
        %402 = vmatprep.subr.mxu0 0.0
        %403 = vmatpush1.msra.mxu0 0.0
        %404 = vmatprep.subr.mxu0 0.0
        %405 = vmatpush1.msra.mxu0 0.0
        %406 = vmatprep.subr.mxu0 0.0
        %407 = vmatpush1.msra.mxu0 0.0
        %408 = vmatprep.subr.mxu0 0.0
        %409 = vmatpush1.msra.mxu0 0.0
        %410 = vmatprep.subr.mxu0 0.0
        %411 = vmatpush1.msra.mxu0 0.0
        %412 = vmatprep.subr.mxu0 0.0
        %413 = vmatpush1.msra.mxu0 0.0
        %414 = vmatprep.subr.mxu0 0.0
        %415 = vmatpush1.msra.mxu0 0.0
        %416 = vmatprep.subr.mxu0 0.0
        %417 = vmatpush1.msra.mxu0 0.0
        %418 = vmatprep.subr.mxu0 0.0
        %419 = vmatpush1.msra.mxu0 0.0
        %420 = vmatprep.subr.mxu0 0.0
        %421 = vmatpush1.msra.mxu0 0.0
        %422 = vmatprep.subr.mxu0 0.0
        %423 = vmatpush1.msra.mxu0 0.0
        %424 = vmatprep.subr.mxu0 0.0
        %425 = vmatpush1.msra.mxu0 0.0
        %426 = vmatprep.subr.mxu0 0.0
        %427 = vmatpush1.msra.mxu0 0.0
        %428 = vmatprep.subr.mxu0 0.0
        %429 = vmatpush1.msra.mxu0 0.0
        %430 = vmatprep.subr.mxu0 0.0
        %431 = vmatpush1.msra.mxu0 0.0
        %432 = vmatprep.subr.mxu0 0.0
        %433 = vmatpush1.msra.mxu0 0.0
        %434 = vmatprep.subr.mxu0 0.0
        %435 = vmatpush1.msra.mxu0 0.0
        %436 = vmatprep.subr.mxu0 0.0
        %437 = vmatpush1.msra.mxu0 0.0
        %438 = vmatprep.subr.mxu0 0.0
        %439 = vmatpush1.msra.mxu0 0.0
        %440 = vmatprep.subr.mxu0 0.0
        %441 = vmatpush1.msra.mxu0 0.0
        %442 = vmatprep.subr.mxu0 0.0
        %443 = vmatpush1.msra.mxu0 0.0
        %444 = vmatprep.subr.mxu0 0.0
        %445 = vmatpush1.msra.mxu0 0.0
        %446 = vmatprep.subr.mxu0 0.0
        %447 = vmatpush1.msra.mxu0 0.0
        %448 = vmatprep.subr.mxu0 0.0
        %449 = vmatpush1.msra.mxu0 0.0
        %450 = vmatprep.subr.mxu0 0.0
        %451 = vmatpush1.msra.mxu0 0.0
        %452 = vmatprep.mubr.f32.mxu0 0.0
        %453 = vmatmul.mubr.f32.gmra.mrb[0].mxu0 %v252
        %v454 = vpop.f32.mrb[0].mxu0
        %v455 = vadd.f32 0.0, %v454
        %v456 = vpop.f32.mrb[0].mxu0
        %v457 = vadd.f32 0.0, %v456
        %458 = vmatprep.mubr.f32.mxu0 0.0
        %459 = vmatmul.mubr.f32.gmra.mrb[0].mxu0 %v255
        %v460 = vpop.f32.mrb[0].mxu0
        %v461 = vadd.f32 0.0, %v460
        %v462 = vpop.f32.mrb[0].mxu0
        %v463 = vadd.f32 0.0, %v462
        %464 = vmatprep.mubr.f32.mxu0 0.0
        %465 = vmatmul.mubr.f32.gmra.mrb[0].mxu0 %v258
        %v466 = vpop.f32.mrb[0].mxu0
        %v467 = vadd.f32 0.0, %v466
        %v468 = vpop.f32.mrb[0].mxu0
        %v469 = vadd.f32 0.0, %v468
        %470 = vmatprep.mubr.f32.mxu0 0.0
        %471 = vmatmul.mubr.f32.gmra.mrb[0].mxu0 %v261
        %v472 = vpop.f32.mrb[0].mxu0
        %v473 = vadd.f32 0.0, %v472
        %v474 = vpop.f32.mrb[0].mxu0
        %v475 = vadd.f32 0.0, %v474
        %476 = vmatprep.mubr.f32.mxu0 0.0
        %477 = vmatmul.mubr.f32.gmra.mrb[0].mxu0 %v264
        %v478 = vpop.f32.mrb[0].mxu0
        %v479 = vadd.f32 0.0, %v478
        %v480 = vpop.f32.mrb[0].mxu0
        %v481 = vadd.f32 0.0, %v480
        %482 = vmatprep.mubr.f32.mxu0 0.0
        %483 = vmatmul.mubr.f32.gmra.mrb[0].mxu0 %v267
        %v484 = vpop.f32.mrb[0].mxu0
        %v485 = vadd.f32 0.0, %v484
        %v486 = vpop.f32.mrb[0].mxu0
        %v487 = vadd.f32 0.0, %v486
        %488 = vmatprep.mubr.f32.mxu0 0.0
        %489 = vmatmul.mubr.f32.gmra.mrb[0].mxu0 %v270
        %v490 = vpop.f32.mrb[0].mxu0
        %v491 = vadd.f32 0.0, %v490
        %v492 = vpop.f32.mrb[0].mxu0
        %v493 = vadd.f32 0.0, %v492
        %494 = vmatprep.mubr.f32.mxu0 0.0
        %495 = vmatmul.mubr.f32.gmra.mrb[0].mxu0 %v273
        %v496 = vpop.f32.mrb[0].mxu0
        %v497 = vadd.f32 0.0, %v496
        %v498 = vpop.f32.mrb[0].mxu0
        %v499 = vadd.f32 0.0, %v498
        %500 = vdwg.mxu0
        %v501 = vld [vmem:[%s2] sm:$0xff]
        %v502 = vld [vmem:[%s2 + $0x8] sm:$0xff]
        %v503 = vld [vmem:[%s2 + $0x10] sm:$0xff]
        %v504 = vld [vmem:[%s2 + $0x18] sm:$0xff]
        %v505 = vld [vmem:[%s2 + $0x20] sm:$0xff]
        %v506 = vld [vmem:[%s2 + $0x28] sm:$0xff]
        %v507 = vld [vmem:[%s2 + $0x30] sm:$0xff]
        %v508 = vld [vmem:[%s2 + $0x38] sm:$0xff]
        %v509 = vld [vmem:[%s2 + $0x40] sm:$0xff]
        %v510 = vld [vmem:[%s2 + $0x48] sm:$0xff]
        %v511 = vld [vmem:[%s2 + $0x50] sm:$0xff]
        %v512 = vld [vmem:[%s2 + $0x58] sm:$0xff]
        %v513 = vld [vmem:[%s2 + $0x60] sm:$0xff]
        %v514 = vld [vmem:[%s2 + $0x68] sm:$0xff]
        %v515 = vld [vmem:[%s2 + $0x70] sm:$0xff]
        %v516 = vld [vmem:[%s2 + $0x78] sm:$0xff]
        %v517 = vld [vmem:[%s2 + $0x80] sm:$0xff]
        %v518 = vld [vmem:[%s2 + $0x88] sm:$0xff]
        %v519 = vld [vmem:[%s2 + $0x90] sm:$0xff]
        %v520 = vld [vmem:[%s2 + $0x98] sm:$0xff]
        %v521 = vld [vmem:[%s2 + $0xa0] sm:$0xff]
        %v522 = vld [vmem:[%s2 + $0xa8] sm:$0xff]
        %v523 = vld [vmem:[%s2 + $0xb0] sm:$0xff]
        %v524 = vld [vmem:[%s2 + $0xb8] sm:$0xff]
        %v525 = vld [vmem:[%s2 + $0xc0] sm:$0xff]
        %v526 = vld [vmem:[%s2 + $0xc8] sm:$0xff]
        %v527 = vld [vmem:[%s2 + $0xd0] sm:$0xff]
        %v528 = vld [vmem:[%s2 + $0xd8] sm:$0xff]
        %v529 = vld [vmem:[%s2 + $0xe0] sm:$0xff]
        %v530 = vld [vmem:[%s2 + $0xe8] sm:$0xff]
        %v531 = vld [vmem:[%s2 + $0xf0] sm:$0xff]
        %v532 = vld [vmem:[%s2 + $0xf8] sm:$0xff]
        %v533 = vld [vmem:[%s2 + $0x100] sm:$0xff]
        %v534 = vld [vmem:[%s2 + $0x108] sm:$0xff]
        %v535 = vld [vmem:[%s2 + $0x110] sm:$0xff]
        %v536 = vld [vmem:[%s2 + $0x118] sm:$0xff]
        %v537 = vld [vmem:[%s2 + $0x120] sm:$0xff]
        %v538 = vld [vmem:[%s2 + $0x128] sm:$0xff]
        %v539 = vld [vmem:[%s2 + $0x130] sm:$0xff]
        %v540 = vld [vmem:[%s2 + $0x138] sm:$0xff]
        %v541 = vld [vmem:[%s2 + $0x140] sm:$0xff]
        %v542 = vld [vmem:[%s2 + $0x148] sm:$0xff]
        %v543 = vld [vmem:[%s2 + $0x150] sm:$0xff]
        %v544 = vld [vmem:[%s2 + $0x158] sm:$0xff]
        %v545 = vld [vmem:[%s2 + $0x160] sm:$0xff]
        %v546 = vld [vmem:[%s2 + $0x168] sm:$0xff]
        %v547 = vld [vmem:[%s2 + $0x170] sm:$0xff]
        %v548 = vld [vmem:[%s2 + $0x178] sm:$0xff]
        %v549 = vld [vmem:[%s2 + $0x180] sm:$0xff]
        %v550 = vld [vmem:[%s2 + $0x188] sm:$0xff]
        %v551 = vld [vmem:[%s2 + $0x190] sm:$0xff]
        %v552 = vld [vmem:[%s2 + $0x198] sm:$0xff]
        %v553 = vld [vmem:[%s2 + $0x1a0] sm:$0xff]
        %v554 = vld [vmem:[%s2 + $0x1a8] sm:$0xff]
        %v555 = vld [vmem:[%s2 + $0x1b0] sm:$0xff]
        %v556 = vld [vmem:[%s2 + $0x1b8] sm:$0xff]
        %v557 = vld [vmem:[%s2 + $0x1c0] sm:$0xff]
        %v558 = vld [vmem:[%s2 + $0x1c8] sm:$0xff]
        %v559 = vld [vmem:[%s2 + $0x1d0] sm:$0xff]
        %v560 = vld [vmem:[%s2 + $0x1d8] sm:$0xff]
        %v561 = vld [vmem:[%s2 + $0x1e0] sm:$0xff]
        %v562 = vld [vmem:[%s2 + $0x1e8] sm:$0xff]
        %v563 = vld [vmem:[%s2 + $0x1f0] sm:$0xff]
        %v564 = vld [vmem:[%s2 + $0x1f8] sm:$0xff]
        %565 = vmatprep.subr.mxu0 0.0
        %566 = vmatpush1.msra.mxu0 %v501
        %567 = vmatprep.subr.mxu0 0.0
        %568 = vmatpush1.msra.mxu0 %v502
        %569 = vmatprep.subr.mxu0 0.0
        %570 = vmatpush1.msra.mxu0 %v503
        %571 = vmatprep.subr.mxu0 0.0
        %572 = vmatpush1.msra.mxu0 %v504
        %573 = vmatprep.subr.mxu0 0.0
        %574 = vmatpush1.msra.mxu0 %v505
        %575 = vmatprep.subr.mxu0 0.0
        %576 = vmatpush1.msra.mxu0 %v506
        %577 = vmatprep.subr.mxu0 0.0
        %578 = vmatpush1.msra.mxu0 %v507
        %579 = vmatprep.subr.mxu0 0.0
        %580 = vmatpush1.msra.mxu0 %v508
        %581 = vmatprep.subr.mxu0 0.0
        %582 = vmatpush1.msra.mxu0 %v509
        %583 = vmatprep.subr.mxu0 0.0
        %584 = vmatpush1.msra.mxu0 %v510
        %585 = vmatprep.subr.mxu0 0.0
        %586 = vmatpush1.msra.mxu0 %v511
        %587 = vmatprep.subr.mxu0 0.0
        %588 = vmatpush1.msra.mxu0 %v512
        %589 = vmatprep.subr.mxu0 0.0
        %590 = vmatpush1.msra.mxu0 %v513
        %591 = vmatprep.subr.mxu0 0.0
        %592 = vmatpush1.msra.mxu0 %v514
        %593 = vmatprep.subr.mxu0 0.0
        %594 = vmatpush1.msra.mxu0 %v515
        %595 = vmatprep.subr.mxu0 0.0
        %596 = vmatpush1.msra.mxu0 %v516
        %597 = vmatprep.subr.mxu0 0.0
        %598 = vmatpush1.msra.mxu0 %v517
        %599 = vmatprep.subr.mxu0 0.0
        %600 = vmatpush1.msra.mxu0 %v518
        %601 = vmatprep.subr.mxu0 0.0
        %602 = vmatpush1.msra.mxu0 %v519
        %603 = vmatprep.subr.mxu0 0.0
        %604 = vmatpush1.msra.mxu0 %v520
        %605 = vmatprep.subr.mxu0 0.0
        %606 = vmatpush1.msra.mxu0 %v521
        %607 = vmatprep.subr.mxu0 0.0
        %608 = vmatpush1.msra.mxu0 %v522
        %609 = vmatprep.subr.mxu0 0.0
        %610 = vmatpush1.msra.mxu0 %v523
        %611 = vmatprep.subr.mxu0 0.0
        %612 = vmatpush1.msra.mxu0 %v524
        %613 = vmatprep.subr.mxu0 0.0
        %614 = vmatpush1.msra.mxu0 %v525
        %615 = vmatprep.subr.mxu0 0.0
        %616 = vmatpush1.msra.mxu0 %v526
        %617 = vmatprep.subr.mxu0 0.0
        %618 = vmatpush1.msra.mxu0 %v527
        %619 = vmatprep.subr.mxu0 0.0
        %620 = vmatpush1.msra.mxu0 %v528
        %621 = vmatprep.subr.mxu0 0.0
        %622 = vmatpush1.msra.mxu0 %v529
        %623 = vmatprep.subr.mxu0 0.0
        %624 = vmatpush1.msra.mxu0 %v530
        %625 = vmatprep.subr.mxu0 0.0
        %626 = vmatpush1.msra.mxu0 %v531
        %627 = vmatprep.subr.mxu0 0.0
        %628 = vmatpush1.msra.mxu0 %v532
        %629 = vmatprep.mubr.f32.mxu0 %v344
        %630 = vmatmul.mubr.f32.gmra.mrb[0].mxu0 %v342
        %v631 = vpop.f32.mrb[0].mxu0
        %v632 = vadd.f32 0.0, %v631
        %v633 = vpop.f32.mrb[0].mxu0
        %634 = vmatprep.mubr.f32.mxu0 %v350
        %635 = vmatmul.mubr.f32.gmra.mrb[0].mxu0 %v348
        %v636 = vpop.f32.mrb[0].mxu0
        %v637 = vadd.f32 0.0, %v636
        %v638 = vpop.f32.mrb[0].mxu0
        %639 = vmatprep.mubr.f32.mxu0 %v356
        %640 = vmatmul.mubr.f32.gmra.mrb[0].mxu0 %v354
        %v641 = vpop.f32.mrb[0].mxu0
        %v642 = vadd.f32 0.0, %v641
        %v643 = vpop.f32.mrb[0].mxu0
        %644 = vmatprep.mubr.f32.mxu0 %v362
        %645 = vmatmul.mubr.f32.gmra.mrb[0].mxu0 %v360
        %v646 = vpop.f32.mrb[0].mxu0
        %v647 = vadd.f32 0.0, %v646
        %v648 = vpop.f32.mrb[0].mxu0
        %649 = vmatprep.mubr.f32.mxu0 %v368
        %650 = vmatmul.mubr.f32.gmra.mrb[0].mxu0 %v366
        %v651 = vpop.f32.mrb[0].mxu0
        %v652 = vadd.f32 0.0, %v651
        %v653 = vpop.f32.mrb[0].mxu0
        %654 = vmatprep.mubr.f32.mxu0 %v374
        %655 = vmatmul.mubr.f32.gmra.mrb[0].mxu0 %v372
        %v656 = vpop.f32.mrb[0].mxu0
        %v657 = vadd.f32 0.0, %v656
        %v658 = vpop.f32.mrb[0].mxu0
        %659 = vmatprep.mubr.f32.mxu0 %v380
        %660 = vmatmul.mubr.f32.gmra.mrb[0].mxu0 %v378
        %v661 = vpop.f32.mrb[0].mxu0
        %v662 = vadd.f32 0.0, %v661
        %v663 = vpop.f32.mrb[0].mxu0
        %664 = vmatprep.mubr.f32.mxu0 %v386
        %665 = vmatmul.mubr.f32.gmra.mrb[0].mxu0 %v384
        %v666 = vpop.f32.mrb[0].mxu0
        %v667 = vadd.f32 0.0, %v666
        %v668 = vpop.f32.mrb[0].mxu0
        %669 = vdwg.mxu0
        %670 = vmatprep.subr.mxu0 0.0
        %671 = vmatpush1.msra.mxu0 %v533
        %672 = vmatprep.subr.mxu0 0.0
        %673 = vmatpush1.msra.mxu0 %v534
        %674 = vmatprep.subr.mxu0 0.0
        %675 = vmatpush1.msra.mxu0 %v535
        %676 = vmatprep.subr.mxu0 0.0
        %677 = vmatpush1.msra.mxu0 %v536
        %678 = vmatprep.subr.mxu0 0.0
        %679 = vmatpush1.msra.mxu0 %v537
        %680 = vmatprep.subr.mxu0 0.0
        %681 = vmatpush1.msra.mxu0 %v538
        %682 = vmatprep.subr.mxu0 0.0
        %683 = vmatpush1.msra.mxu0 %v539
        %684 = vmatprep.subr.mxu0 0.0
        %685 = vmatpush1.msra.mxu0 %v540
        %686 = vmatprep.subr.mxu0 0.0
        %687 = vmatpush1.msra.mxu0 %v541
        %688 = vmatprep.subr.mxu0 0.0
        %689 = vmatpush1.msra.mxu0 %v542
        %690 = vmatprep.subr.mxu0 0.0
        %691 = vmatpush1.msra.mxu0 %v543
        %692 = vmatprep.subr.mxu0 0.0
        %693 = vmatpush1.msra.mxu0 %v544
        %694 = vmatprep.subr.mxu0 0.0
        %695 = vmatpush1.msra.mxu0 %v545
        %696 = vmatprep.subr.mxu0 0.0
        %697 = vmatpush1.msra.mxu0 %v546
        %698 = vmatprep.subr.mxu0 0.0
        %699 = vmatpush1.msra.mxu0 %v547
        %700 = vmatprep.subr.mxu0 0.0
        %701 = vmatpush1.msra.mxu0 %v548
        %702 = vmatprep.subr.mxu0 0.0
        %703 = vmatpush1.msra.mxu0 %v549
        %704 = vmatprep.subr.mxu0 0.0
        %705 = vmatpush1.msra.mxu0 %v550
        %706 = vmatprep.subr.mxu0 0.0
        %707 = vmatpush1.msra.mxu0 %v551
        %708 = vmatprep.subr.mxu0 0.0
        %709 = vmatpush1.msra.mxu0 %v552
        %710 = vmatprep.subr.mxu0 0.0
        %711 = vmatpush1.msra.mxu0 %v553
        %712 = vmatprep.subr.mxu0 0.0
        %713 = vmatpush1.msra.mxu0 %v554
        %714 = vmatprep.subr.mxu0 0.0
        %715 = vmatpush1.msra.mxu0 %v555
        %716 = vmatprep.subr.mxu0 0.0
        %717 = vmatpush1.msra.mxu0 %v556
        %718 = vmatprep.subr.mxu0 0.0
        %719 = vmatpush1.msra.mxu0 %v557
        %720 = vmatprep.subr.mxu0 0.0
        %721 = vmatpush1.msra.mxu0 %v558
        %722 = vmatprep.subr.mxu0 0.0
        %723 = vmatpush1.msra.mxu0 %v559
        %724 = vmatprep.subr.mxu0 0.0
        %725 = vmatpush1.msra.mxu0 %v560
        %726 = vmatprep.subr.mxu0 0.0
        %727 = vmatpush1.msra.mxu0 %v561
        %728 = vmatprep.subr.mxu0 0.0
        %729 = vmatpush1.msra.mxu0 %v562
        %730 = vmatprep.subr.mxu0 0.0
        %731 = vmatpush1.msra.mxu0 %v563
        %732 = vmatprep.subr.mxu0 0.0
        %733 = vmatpush1.msra.mxu0 %v564
        %734 = vmatprep.mubr.f32.mxu0 %v457
        %735 = vmatmul.mubr.f32.gmra.mrb[0].mxu0 %v455
        %v736 = vpop.f32.mrb[0].mxu0
        %v737 = vadd.f32 %v632, %v736
        %v738 = vpop.f32.mrb[0].mxu0
        %739 = vmatprep.mubr.f32.mxu0 %v463
        %740 = vmatmul.mubr.f32.gmra.mrb[0].mxu0 %v461
        %v741 = vpop.f32.mrb[0].mxu0
        %v742 = vadd.f32 %v637, %v741
        %v743 = vpop.f32.mrb[0].mxu0
        %744 = vmatprep.mubr.f32.mxu0 %v469
        %745 = vmatmul.mubr.f32.gmra.mrb[0].mxu0 %v467
        %v746 = vpop.f32.mrb[0].mxu0
        %v747 = vadd.f32 %v642, %v746
        %v748 = vpop.f32.mrb[0].mxu0
        %749 = vmatprep.mubr.f32.mxu0 %v475
        %750 = vmatmul.mubr.f32.gmra.mrb[0].mxu0 %v473
        %v751 = vpop.f32.mrb[0].mxu0
        %v752 = vadd.f32 %v647, %v751
        %v753 = vpop.f32.mrb[0].mxu0
        %754 = vmatprep.mubr.f32.mxu0 %v481
        %755 = vmatmul.mubr.f32.gmra.mrb[0].mxu0 %v479
        %v756 = vpop.f32.mrb[0].mxu0
        %v757 = vadd.f32 %v652, %v756
        %v758 = vpop.f32.mrb[0].mxu0
        %759 = vmatprep.mubr.f32.mxu0 %v487
        %760 = vmatmul.mubr.f32.gmra.mrb[0].mxu0 %v485
        %v761 = vpop.f32.mrb[0].mxu0
        %v762 = vadd.f32 %v657, %v761
        %v763 = vpop.f32.mrb[0].mxu0
        %764 = vmatprep.mubr.f32.mxu0 %v493
        %765 = vmatmul.mubr.f32.gmra.mrb[0].mxu0 %v491
        %v766 = vpop.f32.mrb[0].mxu0
        %v767 = vadd.f32 %v662, %v766
        %v768 = vpop.f32.mrb[0].mxu0
        %769 = vmatprep.mubr.f32.mxu0 %v499
        %770 = vmatmul.mubr.f32.gmra.mrb[0].mxu0 %v497
        %v771 = vpop.f32.mrb[0].mxu0
        %v772 = vadd.f32 %v667, %v771
        %v773 = vpop.f32.mrb[0].mxu0
        %774 = vdwg.mxu0
        %v775 = vmul.f32 %v342, %v342
        %v776 = vmul.f32 %v344, %v344
        %v777 = vmul.f32 %v455, %v455
        %v778 = vmul.f32 %v457, %v457
        %v779 = vmul.f32 %v348, %v348
        %v780 = vmul.f32 %v350, %v350
        %v781 = vmul.f32 %v461, %v461
        %v782 = vmul.f32 %v463, %v463
        %v783 = vmul.f32 %v354, %v354
        %v784 = vmul.f32 %v356, %v356
        %v785 = vmul.f32 %v467, %v467
        %v786 = vmul.f32 %v469, %v469
        %v787 = vmul.f32 %v360, %v360
        %v788 = vmul.f32 %v362, %v362
        %v789 = vmul.f32 %v473, %v473
        %v790 = vmul.f32 %v475, %v475
        %v791 = vmul.f32 %v366, %v366
        %v792 = vmul.f32 %v368, %v368
        %v793 = vmul.f32 %v479, %v479
        %v794 = vmul.f32 %v481, %v481
        %v795 = vmul.f32 %v372, %v372
        %v796 = vmul.f32 %v374, %v374
        %v797 = vmul.f32 %v485, %v485
        %v798 = vmul.f32 %v487, %v487
        %v799 = vmul.f32 %v378, %v378
        %v800 = vmul.f32 %v380, %v380
        %v801 = vmul.f32 %v491, %v491
        %v802 = vmul.f32 %v493, %v493
        %v803 = vmul.f32 %v384, %v384
        %v804 = vmul.f32 %v386, %v386
        %v805 = vmul.f32 %v497, %v497
        %v806 = vmul.f32 %v499, %v499
        %807 = vmatprep.subr.mxu0 0.0
        %808 = vmatpush1.msra.mxu0 %v501
        %809 = vmatprep.subr.mxu0 0.0
        %810 = vmatpush1.msra.mxu0 %v502
        %811 = vmatprep.subr.mxu0 0.0
        %812 = vmatpush1.msra.mxu0 %v503
        %813 = vmatprep.subr.mxu0 0.0
        %814 = vmatpush1.msra.mxu0 %v504
        %815 = vmatprep.subr.mxu0 0.0
        %816 = vmatpush1.msra.mxu0 %v505
        %817 = vmatprep.subr.mxu0 0.0
        %818 = vmatpush1.msra.mxu0 %v506
        %819 = vmatprep.subr.mxu0 0.0
        %820 = vmatpush1.msra.mxu0 %v507
        %821 = vmatprep.subr.mxu0 0.0
        %822 = vmatpush1.msra.mxu0 %v508
        %823 = vmatprep.subr.mxu0 0.0
        %824 = vmatpush1.msra.mxu0 %v509
        %825 = vmatprep.subr.mxu0 0.0
        %826 = vmatpush1.msra.mxu0 %v510
        %827 = vmatprep.subr.mxu0 0.0
        %828 = vmatpush1.msra.mxu0 %v511
        %829 = vmatprep.subr.mxu0 0.0
        %830 = vmatpush1.msra.mxu0 %v512
        %831 = vmatprep.subr.mxu0 0.0
        %832 = vmatpush1.msra.mxu0 %v513
        %833 = vmatprep.subr.mxu0 0.0
        %834 = vmatpush1.msra.mxu0 %v514
        %835 = vmatprep.subr.mxu0 0.0
        %836 = vmatpush1.msra.mxu0 %v515
        %837 = vmatprep.subr.mxu0 0.0
        %838 = vmatpush1.msra.mxu0 %v516
        %839 = vmatprep.subr.mxu0 0.0
        %840 = vmatpush1.msra.mxu0 %v517
        %841 = vmatprep.subr.mxu0 0.0
        %842 = vmatpush1.msra.mxu0 %v518
        %843 = vmatprep.subr.mxu0 0.0
        %844 = vmatpush1.msra.mxu0 %v519
        %845 = vmatprep.subr.mxu0 0.0
        %846 = vmatpush1.msra.mxu0 %v520
        %847 = vmatprep.subr.mxu0 0.0
        %848 = vmatpush1.msra.mxu0 %v521
        %849 = vmatprep.subr.mxu0 0.0
        %850 = vmatpush1.msra.mxu0 %v522
        %851 = vmatprep.subr.mxu0 0.0
        %852 = vmatpush1.msra.mxu0 %v523
        %853 = vmatprep.subr.mxu0 0.0
        %854 = vmatpush1.msra.mxu0 %v524
        %855 = vmatprep.subr.mxu0 0.0
        %856 = vmatpush1.msra.mxu0 %v525
        %857 = vmatprep.subr.mxu0 0.0
        %858 = vmatpush1.msra.mxu0 %v526
        %859 = vmatprep.subr.mxu0 0.0
        %860 = vmatpush1.msra.mxu0 %v527
        %861 = vmatprep.subr.mxu0 0.0
        %862 = vmatpush1.msra.mxu0 %v528
        %863 = vmatprep.subr.mxu0 0.0
        %864 = vmatpush1.msra.mxu0 %v529
        %865 = vmatprep.subr.mxu0 0.0
        %866 = vmatpush1.msra.mxu0 %v530
        %867 = vmatprep.subr.mxu0 0.0
        %868 = vmatpush1.msra.mxu0 %v531
        %869 = vmatprep.subr.mxu0 0.0
        %870 = vmatpush1.msra.mxu0 %v532
        %871 = vmatprep.mubr.f32.mxu0 %v776
        %872 = vmatmul.mubr.f32.gmra.mrb[0].mxu0 %v775
        %v873 = vpop.f32.mrb[0].mxu0
        %v874 = vadd.f32 0.0, %v873
        %v875 = vpop.f32.mrb[0].mxu0
        %876 = vmatprep.mubr.f32.mxu0 %v780
        %877 = vmatmul.mubr.f32.gmra.mrb[0].mxu0 %v779
        %v878 = vpop.f32.mrb[0].mxu0
        %v879 = vadd.f32 0.0, %v878
        %v880 = vpop.f32.mrb[0].mxu0
        %881 = vmatprep.mubr.f32.mxu0 %v784
        %882 = vmatmul.mubr.f32.gmra.mrb[0].mxu0 %v783
        %v883 = vpop.f32.mrb[0].mxu0
        %v884 = vadd.f32 0.0, %v883
        %v885 = vpop.f32.mrb[0].mxu0
        %886 = vmatprep.mubr.f32.mxu0 %v788
        %887 = vmatmul.mubr.f32.gmra.mrb[0].mxu0 %v787
        %v888 = vpop.f32.mrb[0].mxu0
        %v889 = vadd.f32 0.0, %v888
        %v890 = vpop.f32.mrb[0].mxu0
        %891 = vmatprep.mubr.f32.mxu0 %v792
        %892 = vmatmul.mubr.f32.gmra.mrb[0].mxu0 %v791
        %v893 = vpop.f32.mrb[0].mxu0
        %v894 = vadd.f32 0.0, %v893
        %v895 = vpop.f32.mrb[0].mxu0
        %896 = vmatprep.mubr.f32.mxu0 %v796
        %897 = vmatmul.mubr.f32.gmra.mrb[0].mxu0 %v795
        %v898 = vpop.f32.mrb[0].mxu0
        %v899 = vadd.f32 0.0, %v898
        %v900 = vpop.f32.mrb[0].mxu0
        %901 = vmatprep.mubr.f32.mxu0 %v800
        %902 = vmatmul.mubr.f32.gmra.mrb[0].mxu0 %v799
        %v903 = vpop.f32.mrb[0].mxu0
        %v904 = vadd.f32 0.0, %v903
        %v905 = vpop.f32.mrb[0].mxu0
        %906 = vmatprep.mubr.f32.mxu0 %v804
        %907 = vmatmul.mubr.f32.gmra.mrb[0].mxu0 %v803
        %v908 = vpop.f32.mrb[0].mxu0
        %v909 = vadd.f32 0.0, %v908
        %v910 = vpop.f32.mrb[0].mxu0
        %911 = vdwg.mxu0
        %912 = vmatprep.subr.mxu0 0.0
        %913 = vmatpush1.msra.mxu0 %v533
        %914 = vmatprep.subr.mxu0 0.0
        %915 = vmatpush1.msra.mxu0 %v534
        %916 = vmatprep.subr.mxu0 0.0
        %917 = vmatpush1.msra.mxu0 %v535
        %918 = vmatprep.subr.mxu0 0.0
        %919 = vmatpush1.msra.mxu0 %v536
        %920 = vmatprep.subr.mxu0 0.0
        %921 = vmatpush1.msra.mxu0 %v537
        %922 = vmatprep.subr.mxu0 0.0
        %923 = vmatpush1.msra.mxu0 %v538
        %924 = vmatprep.subr.mxu0 0.0
        %925 = vmatpush1.msra.mxu0 %v539
        %926 = vmatprep.subr.mxu0 0.0
        %927 = vmatpush1.msra.mxu0 %v540
        %928 = vmatprep.subr.mxu0 0.0
        %929 = vmatpush1.msra.mxu0 %v541
        %930 = vmatprep.subr.mxu0 0.0
        %931 = vmatpush1.msra.mxu0 %v542
        %932 = vmatprep.subr.mxu0 0.0
        %933 = vmatpush1.msra.mxu0 %v543
        %934 = vmatprep.subr.mxu0 0.0
        %935 = vmatpush1.msra.mxu0 %v544
        %936 = vmatprep.subr.mxu0 0.0
        %937 = vmatpush1.msra.mxu0 %v545
        %938 = vmatprep.subr.mxu0 0.0
        %939 = vmatpush1.msra.mxu0 %v546
        %940 = vmatprep.subr.mxu0 0.0
        %941 = vmatpush1.msra.mxu0 %v547
        %942 = vmatprep.subr.mxu0 0.0
        %943 = vmatpush1.msra.mxu0 %v548
        %944 = vmatprep.subr.mxu0 0.0
        %945 = vmatpush1.msra.mxu0 %v549
        %946 = vmatprep.subr.mxu0 0.0
        %947 = vmatpush1.msra.mxu0 %v550
        %948 = vmatprep.subr.mxu0 0.0
        %949 = vmatpush1.msra.mxu0 %v551
        %950 = vmatprep.subr.mxu0 0.0
        %951 = vmatpush1.msra.mxu0 %v552
        %952 = vmatprep.subr.mxu0 0.0
        %953 = vmatpush1.msra.mxu0 %v553
        %954 = vmatprep.subr.mxu0 0.0
        %955 = vmatpush1.msra.mxu0 %v554
        %956 = vmatprep.subr.mxu0 0.0
        %957 = vmatpush1.msra.mxu0 %v555
        %958 = vmatprep.subr.mxu0 0.0
        %959 = vmatpush1.msra.mxu0 %v556
        %960 = vmatprep.subr.mxu0 0.0
        %961 = vmatpush1.msra.mxu0 %v557
        %962 = vmatprep.subr.mxu0 0.0
        %963 = vmatpush1.msra.mxu0 %v558
        %964 = vmatprep.subr.mxu0 0.0
        %965 = vmatpush1.msra.mxu0 %v559
        %966 = vmatprep.subr.mxu0 0.0
        %967 = vmatpush1.msra.mxu0 %v560
        %968 = vmatprep.subr.mxu0 0.0
        %969 = vmatpush1.msra.mxu0 %v561
        %970 = vmatprep.subr.mxu0 0.0
        %971 = vmatpush1.msra.mxu0 %v562
        %972 = vmatprep.subr.mxu0 0.0
        %973 = vmatpush1.msra.mxu0 %v563
        %974 = vmatprep.subr.mxu0 0.0
        %975 = vmatpush1.msra.mxu0 %v564
        %976 = vmatprep.mubr.f32.mxu0 %v778
        %977 = vmatmul.mubr.f32.gmra.mrb[0].mxu0 %v777
        %v978 = vpop.f32.mrb[0].mxu0
        %v979 = vadd.f32 %v874, %v978
        %v980 = vpop.f32.mrb[0].mxu0
        %981 = vmatprep.mubr.f32.mxu0 %v782
        %982 = vmatmul.mubr.f32.gmra.mrb[0].mxu0 %v781
        %v983 = vpop.f32.mrb[0].mxu0
        %v984 = vadd.f32 %v879, %v983
        %v985 = vpop.f32.mrb[0].mxu0
        %986 = vmatprep.mubr.f32.mxu0 %v786
        %987 = vmatmul.mubr.f32.gmra.mrb[0].mxu0 %v785
        %v988 = vpop.f32.mrb[0].mxu0
        %v989 = vadd.f32 %v884, %v988
        %v990 = vpop.f32.mrb[0].mxu0
        %991 = vmatprep.mubr.f32.mxu0 %v790
        %992 = vmatmul.mubr.f32.gmra.mrb[0].mxu0 %v789
        %v993 = vpop.f32.mrb[0].mxu0
        %v994 = vadd.f32 %v889, %v993
        %v995 = vpop.f32.mrb[0].mxu0
        %996 = vmatprep.mubr.f32.mxu0 %v794
        %997 = vmatmul.mubr.f32.gmra.mrb[0].mxu0 %v793
        %v998 = vpop.f32.mrb[0].mxu0
        %v999 = vadd.f32 %v894, %v998
        %v1000 = vpop.f32.mrb[0].mxu0
        %1001 = vmatprep.mubr.f32.mxu0 %v798
        %1002 = vmatmul.mubr.f32.gmra.mrb[0].mxu0 %v797
        %v1003 = vpop.f32.mrb[0].mxu0
        %v1004 = vadd.f32 %v899, %v1003
        %v1005 = vpop.f32.mrb[0].mxu0
        %1006 = vmatprep.mubr.f32.mxu0 %v802
        %1007 = vmatmul.mubr.f32.gmra.mrb[0].mxu0 %v801
        %v1008 = vpop.f32.mrb[0].mxu0
        %v1009 = vadd.f32 %v904, %v1008
        %v1010 = vpop.f32.mrb[0].mxu0
        %1011 = vmatprep.mubr.f32.mxu0 %v806
        %1012 = vmatmul.mubr.f32.gmra.mrb[0].mxu0 %v805
        %v1013 = vpop.f32.mrb[0].mxu0
        %v1014 = vadd.f32 %v909, %v1013
        %v1015 = vpop.f32.mrb[0].mxu0
        %1016 = vdwg.mxu0
        %v1017 = vmul.f32 %v737, %v737
        %v1018 = vmul.f32 %v742, %v742
        %v1019 = vmul.f32 %v747, %v747
        %v1020 = vmul.f32 %v752, %v752
        %v1021 = vmul.f32 %v757, %v757
        %v1022 = vmul.f32 %v762, %v762
        %v1023 = vmul.f32 %v767, %v767
        %v1024 = vmul.f32 %v772, %v772
        %v1025 = vsub.f32 %v979, %v1017
        %v1026 = vsub.f32 %v984, %v1018
        %v1027 = vsub.f32 %v989, %v1019
        %v1028 = vsub.f32 %v994, %v1020
        %v1029 = vsub.f32 %v999, %v1021
        %v1030 = vsub.f32 %v1004, %v1022
        %v1031 = vsub.f32 %v1009, %v1023
        %v1032 = vsub.f32 %v1014, %v1024
        %v1033 = vmax.f32 %v1025, 0.0
        %v1034 = vmax.f32 %v1026, 0.0
        %v1035 = vmax.f32 %v1027, 0.0
        %v1036 = vmax.f32 %v1028, 0.0
        %v1037 = vmax.f32 %v1029, 0.0
        %v1038 = vmax.f32 %v1030, 0.0
        %v1039 = vmax.f32 %v1031, 0.0
        %v1040 = vmax.f32 %v1032, 0.0
        %v1041 = vadd.f32 %v1033, 1e-05
        %v1042 = vadd.f32 %v1034, 1e-05
        %v1043 = vadd.f32 %v1035, 1e-05
        %v1044 = vadd.f32 %v1036, 1e-05
        %v1045 = vadd.f32 %v1037, 1e-05
        %v1046 = vadd.f32 %v1038, 1e-05
        %v1047 = vadd.f32 %v1039, 1e-05
        %v1048 = vadd.f32 %v1040, 1e-05
        %v1049 = vrsqrt.pop %v1041
        %v1050 = vrsqrt.pop %v1042
        %v1051 = vrsqrt.pop %v1043
        %v1052 = vrsqrt.pop %v1044
        %v1053 = vrsqrt.pop %v1045
        %v1054 = vrsqrt.pop %v1046
        %v1055 = vrsqrt.pop %v1047
        %v1056 = vrsqrt.pop %v1048
        %v1057 = vmul.f32 %v737, %v1049
        %v1058 = vmul.f32 %v742, %v1050
        %v1059 = vmul.f32 %v747, %v1051
        %v1060 = vmul.f32 %v752, %v1052
        %v1061 = vmul.f32 %v757, %v1053
        %v1062 = vmul.f32 %v762, %v1054
        %v1063 = vmul.f32 %v767, %v1055
        %v1064 = vmul.f32 %v772, %v1056
        %v1065 = vld [vmem:[%s3] sm:$0xff]
        %v1066 = vld [vmem:[%s3 + $0x20] sm:$0xff]
        %vm1067 = vcmask 130048
        %v1069 = vsel %vm1067, %v1049, 0
        %v1072 = vsel %vm1067, %v1050, 0
        %v1075 = vsel %vm1067, %v1051, 0
        %v1078 = vsel %vm1067, %v1052, 0
        %v1081 = vsel %vm1067, %v1053, 0
        %v1084 = vsel %vm1067, %v1054, 0
        %v1087 = vsel %vm1067, %v1055, 0
        %v1090 = vsel %vm1067, %v1056, 0
        %1092 = vmatprep.subr.mxu0 0.0
        %1093 = vmatpush1.msra.mxu0 %v1065
        %1094 = vmatprep.subr.mxu0 0.0
        %1095 = vmatpush1.msra.mxu0 %v1066
        %1096 = vmatprep.subr.mxu0 0.0
        %1097 = vmatpush1.msra.mxu0 0.0
        %1098 = vmatprep.subr.mxu0 0.0
        %1099 = vmatpush1.msra.mxu0 0.0
        %1100 = vmatprep.subr.mxu0 0.0
        %1101 = vmatpush1.msra.mxu0 0.0
        %1102 = vmatprep.subr.mxu0 0.0
        %1103 = vmatpush1.msra.mxu0 0.0
        %1104 = vmatprep.subr.mxu0 0.0
        %1105 = vmatpush1.msra.mxu0 0.0
        %1106 = vmatprep.subr.mxu0 0.0
        %1107 = vmatpush1.msra.mxu0 0.0
        %1108 = vmatprep.subr.mxu0 0.0
        %1109 = vmatpush1.msra.mxu0 0.0
        %1110 = vmatprep.subr.mxu0 0.0
        %1111 = vmatpush1.msra.mxu0 0.0
        %1112 = vmatprep.subr.mxu0 0.0
        %1113 = vmatpush1.msra.mxu0 0.0
        %1114 = vmatprep.subr.mxu0 0.0
        %1115 = vmatpush1.msra.mxu0 0.0
        %1116 = vmatprep.subr.mxu0 0.0
        %1117 = vmatpush1.msra.mxu0 0.0
        %1118 = vmatprep.subr.mxu0 0.0
        %1119 = vmatpush1.msra.mxu0 0.0
        %1120 = vmatprep.subr.mxu0 0.0
        %1121 = vmatpush1.msra.mxu0 0.0
        %1122 = vmatprep.subr.mxu0 0.0
        %1123 = vmatpush1.msra.mxu0 0.0
        %1124 = vmatprep.subr.mxu0 0.0
        %1125 = vmatpush1.msra.mxu0 0.0
        %1126 = vmatprep.subr.mxu0 0.0
        %1127 = vmatpush1.msra.mxu0 0.0
        %1128 = vmatprep.subr.mxu0 0.0
        %1129 = vmatpush1.msra.mxu0 0.0
        %1130 = vmatprep.subr.mxu0 0.0
        %1131 = vmatpush1.msra.mxu0 0.0
        %1132 = vmatprep.subr.mxu0 0.0
        %1133 = vmatpush1.msra.mxu0 0.0
        %1134 = vmatprep.subr.mxu0 0.0
        %1135 = vmatpush1.msra.mxu0 0.0
        %1136 = vmatprep.subr.mxu0 0.0
        %1137 = vmatpush1.msra.mxu0 0.0
        %1138 = vmatprep.subr.mxu0 0.0
        %1139 = vmatpush1.msra.mxu0 0.0
        %1140 = vmatprep.subr.mxu0 0.0
        %1141 = vmatpush1.msra.mxu0 0.0
        %1142 = vmatprep.subr.mxu0 0.0
        %1143 = vmatpush1.msra.mxu0 0.0
        %1144 = vmatprep.subr.mxu0 0.0
        %1145 = vmatpush1.msra.mxu0 0.0
        %1146 = vmatprep.subr.mxu0 0.0
        %1147 = vmatpush1.msra.mxu0 0.0
        %1148 = vmatprep.subr.mxu0 0.0
        %1149 = vmatpush1.msra.mxu0 0.0
        %1150 = vmatprep.subr.mxu0 0.0
        %1151 = vmatpush1.msra.mxu0 0.0
        %1152 = vmatprep.subr.mxu0 0.0
        %1153 = vmatpush1.msra.mxu0 0.0
        %1154 = vmatprep.subr.mxu0 0.0
        %1155 = vmatpush1.msra.mxu0 0.0
        %1156 = vmatprep.mubr.f32.mxu0 0.0
        %1157 = vmatmul.mubr.f32.gmra.mrb[0].mxu0 %v1069
        %v1158 = vpop.f32.mrb[0].mxu0
        %v1159 = vadd.f32 0.0, %v1158
        %v1160 = vpop.f32.mrb[0].mxu0
        %1161 = vmatprep.mubr.f32.mxu0 0.0
        %1162 = vmatmul.mubr.f32.gmra.mrb[0].mxu0 %v1072
        %v1163 = vpop.f32.mrb[0].mxu0
        %v1164 = vadd.f32 0.0, %v1163
        %v1165 = vpop.f32.mrb[0].mxu0
        %1166 = vmatprep.mubr.f32.mxu0 0.0
        %1167 = vmatmul.mubr.f32.gmra.mrb[0].mxu0 %v1075
        %v1168 = vpop.f32.mrb[0].mxu0
        %v1169 = vadd.f32 0.0, %v1168
        %v1170 = vpop.f32.mrb[0].mxu0
        %1171 = vmatprep.mubr.f32.mxu0 0.0
        %1172 = vmatmul.mubr.f32.gmra.mrb[0].mxu0 %v1078
        %v1173 = vpop.f32.mrb[0].mxu0
        %v1174 = vadd.f32 0.0, %v1173
        %v1175 = vpop.f32.mrb[0].mxu0
        %1176 = vmatprep.mubr.f32.mxu0 0.0
        %1177 = vmatmul.mubr.f32.gmra.mrb[0].mxu0 %v1081
        %v1178 = vpop.f32.mrb[0].mxu0
        %v1179 = vadd.f32 0.0, %v1178
        %v1180 = vpop.f32.mrb[0].mxu0
        %1181 = vmatprep.mubr.f32.mxu0 0.0
        %1182 = vmatmul.mubr.f32.gmra.mrb[0].mxu0 %v1084
        %v1183 = vpop.f32.mrb[0].mxu0
        %v1184 = vadd.f32 0.0, %v1183
        %v1185 = vpop.f32.mrb[0].mxu0
        %1186 = vmatprep.mubr.f32.mxu0 0.0
        %1187 = vmatmul.mubr.f32.gmra.mrb[0].mxu0 %v1087
        %v1188 = vpop.f32.mrb[0].mxu0
        %v1189 = vadd.f32 0.0, %v1188
        %v1190 = vpop.f32.mrb[0].mxu0
        %1191 = vmatprep.mubr.f32.mxu0 0.0
        %1192 = vmatmul.mubr.f32.gmra.mrb[0].mxu0 %v1090
        %v1193 = vpop.f32.mrb[0].mxu0
        %v1194 = vadd.f32 0.0, %v1193
        %v1195 = vpop.f32.mrb[0].mxu0
        %1196 = vdwg.mxu0
        %v1198 = vsel %vm1067, %v1057, 0
        %v1201 = vsel %vm1067, %v1058, 0
        %v1204 = vsel %vm1067, %v1059, 0
        %v1207 = vsel %vm1067, %v1060, 0
        %v1210 = vsel %vm1067, %v1061, 0
        %v1213 = vsel %vm1067, %v1062, 0
        %v1216 = vsel %vm1067, %v1063, 0
        %v1219 = vsel %vm1067, %v1064, 0
        %1221 = vmatprep.subr.mxu0 0.0
        %1222 = vmatpush1.msra.mxu0 %v1065
        %1223 = vmatprep.subr.mxu0 0.0
        %1224 = vmatpush1.msra.mxu0 %v1066
        %1225 = vmatprep.subr.mxu0 0.0
        %1226 = vmatpush1.msra.mxu0 0.0
        %1227 = vmatprep.subr.mxu0 0.0
        %1228 = vmatpush1.msra.mxu0 0.0
        %1229 = vmatprep.subr.mxu0 0.0
        %1230 = vmatpush1.msra.mxu0 0.0
        %1231 = vmatprep.subr.mxu0 0.0
        %1232 = vmatpush1.msra.mxu0 0.0
        %1233 = vmatprep.subr.mxu0 0.0
        %1234 = vmatpush1.msra.mxu0 0.0
        %1235 = vmatprep.subr.mxu0 0.0
        %1236 = vmatpush1.msra.mxu0 0.0
        %1237 = vmatprep.subr.mxu0 0.0
        %1238 = vmatpush1.msra.mxu0 0.0
        %1239 = vmatprep.subr.mxu0 0.0
        %1240 = vmatpush1.msra.mxu0 0.0
        %1241 = vmatprep.subr.mxu0 0.0
        %1242 = vmatpush1.msra.mxu0 0.0
        %1243 = vmatprep.subr.mxu0 0.0
        %1244 = vmatpush1.msra.mxu0 0.0
        %1245 = vmatprep.subr.mxu0 0.0
        %1246 = vmatpush1.msra.mxu0 0.0
        %1247 = vmatprep.subr.mxu0 0.0
        %1248 = vmatpush1.msra.mxu0 0.0
        %1249 = vmatprep.subr.mxu0 0.0
        %1250 = vmatpush1.msra.mxu0 0.0
        %1251 = vmatprep.subr.mxu0 0.0
        %1252 = vmatpush1.msra.mxu0 0.0
        %1253 = vmatprep.subr.mxu0 0.0
        %1254 = vmatpush1.msra.mxu0 0.0
        %1255 = vmatprep.subr.mxu0 0.0
        %1256 = vmatpush1.msra.mxu0 0.0
        %1257 = vmatprep.subr.mxu0 0.0
        %1258 = vmatpush1.msra.mxu0 0.0
        %1259 = vmatprep.subr.mxu0 0.0
        %1260 = vmatpush1.msra.mxu0 0.0
        %1261 = vmatprep.subr.mxu0 0.0
        %1262 = vmatpush1.msra.mxu0 0.0
        %1263 = vmatprep.subr.mxu0 0.0
        %1264 = vmatpush1.msra.mxu0 0.0
        %1265 = vmatprep.subr.mxu0 0.0
        %1266 = vmatpush1.msra.mxu0 0.0
        %1267 = vmatprep.subr.mxu0 0.0
        %1268 = vmatpush1.msra.mxu0 0.0
        %1269 = vmatprep.subr.mxu0 0.0
        %1270 = vmatpush1.msra.mxu0 0.0
        %1271 = vmatprep.subr.mxu0 0.0
        %1272 = vmatpush1.msra.mxu0 0.0
        %1273 = vmatprep.subr.mxu0 0.0
        %1274 = vmatpush1.msra.mxu0 0.0
        %1275 = vmatprep.subr.mxu0 0.0
        %1276 = vmatpush1.msra.mxu0 0.0
        %1277 = vmatprep.subr.mxu0 0.0
        %1278 = vmatpush1.msra.mxu0 0.0
        %1279 = vmatprep.subr.mxu0 0.0
        %1280 = vmatpush1.msra.mxu0 0.0
        %1281 = vmatprep.subr.mxu0 0.0
        %1282 = vmatpush1.msra.mxu0 0.0
        %1283 = vmatprep.subr.mxu0 0.0
        %1284 = vmatpush1.msra.mxu0 0.0
        %1285 = vmatprep.mubr.f32.mxu0 0.0
        %1286 = vmatmul.mubr.f32.gmra.mrb[0].mxu0 %v1198
        %v1287 = vpop.f32.mrb[0].mxu0
        %v1288 = vadd.f32 0.0, %v1287
        %v1289 = vpop.f32.mrb[0].mxu0
        %1290 = vmatprep.mubr.f32.mxu0 0.0
        %1291 = vmatmul.mubr.f32.gmra.mrb[0].mxu0 %v1201
        %v1292 = vpop.f32.mrb[0].mxu0
        %v1293 = vadd.f32 0.0, %v1292
        %v1294 = vpop.f32.mrb[0].mxu0
        %1295 = vmatprep.mubr.f32.mxu0 0.0
        %1296 = vmatmul.mubr.f32.gmra.mrb[0].mxu0 %v1204
        %v1297 = vpop.f32.mrb[0].mxu0
        %v1298 = vadd.f32 0.0, %v1297
        %v1299 = vpop.f32.mrb[0].mxu0
        %1300 = vmatprep.mubr.f32.mxu0 0.0
        %1301 = vmatmul.mubr.f32.gmra.mrb[0].mxu0 %v1207
        %v1302 = vpop.f32.mrb[0].mxu0
        %v1303 = vadd.f32 0.0, %v1302
        %v1304 = vpop.f32.mrb[0].mxu0
        %1305 = vmatprep.mubr.f32.mxu0 0.0
        %1306 = vmatmul.mubr.f32.gmra.mrb[0].mxu0 %v1210
        %v1307 = vpop.f32.mrb[0].mxu0
        %v1308 = vadd.f32 0.0, %v1307
        %v1309 = vpop.f32.mrb[0].mxu0
        %1310 = vmatprep.mubr.f32.mxu0 0.0
        %1311 = vmatmul.mubr.f32.gmra.mrb[0].mxu0 %v1213
        %v1312 = vpop.f32.mrb[0].mxu0
        %v1313 = vadd.f32 0.0, %v1312
        %v1314 = vpop.f32.mrb[0].mxu0
        %1315 = vmatprep.mubr.f32.mxu0 0.0
        %1316 = vmatmul.mubr.f32.gmra.mrb[0].mxu0 %v1216
        %v1317 = vpop.f32.mrb[0].mxu0
        %v1318 = vadd.f32 0.0, %v1317
        %v1319 = vpop.f32.mrb[0].mxu0
        %1320 = vmatprep.mubr.f32.mxu0 0.0
        %1321 = vmatmul.mubr.f32.gmra.mrb[0].mxu0 %v1219
        %v1322 = vpop.f32.mrb[0].mxu0
        %v1323 = vadd.f32 0.0, %v1322
        %v1324 = vpop.f32.mrb[0].mxu0
        %1325 = vdwg.mxu0
        %v1326 = vmul.f32 %v342, %v1159
        %v1327 = vmul.f32 %v348, %v1164
        %v1328 = vmul.f32 %v354, %v1169
        %v1329 = vmul.f32 %v360, %v1174
        %v1330 = vmul.f32 %v366, %v1179
        %v1331 = vmul.f32 %v372, %v1184
        %v1332 = vmul.f32 %v378, %v1189
        %v1333 = vmul.f32 %v384, %v1194
        %v1334 = vsub.f32 %v1326, %v1288
        %v1335 = vsub.f32 %v1327, %v1293
        %v1336 = vsub.f32 %v1328, %v1298
        %v1337 = vsub.f32 %v1329, %v1303
        %v1338 = vsub.f32 %v1330, %v1308
        %v1339 = vsub.f32 %v1331, %v1313
        %v1340 = vsub.f32 %v1332, %v1318
        %v1341 = vsub.f32 %v1333, %v1323
        %v1342 = vld [vmem:[%s4] sm:$0x1]
        %v1344 = vlaneseq
        %v1345 = vshrl.u32 %v1344, 7
        %v1346 = vsub.s32 0, %v1345
        %v1347 = vrot.slane %v1342, %v1346
        %v1349 = vadd.f32 %v1334, %v1347
        %v1350 = vadd.f32 %v1335, %v1347
        %v1351 = vadd.f32 %v1336, %v1347
        %v1352 = vadd.f32 %v1337, %v1347
        %v1353 = vadd.f32 %v1338, %v1347
        %v1354 = vadd.f32 %v1339, %v1347
        %v1355 = vadd.f32 %v1340, %v1347
        %v1356 = vadd.f32 %v1341, %v1347
        %1357 = vst [vmem:[%s218] sm:$0xff] %v1349
        %1358 = vst [vmem:[%s218 + $0x20] sm:$0xff] %v1350
        %1359 = vst [vmem:[%s218 + $0x40] sm:$0xff] %v1351
        %1360 = vst [vmem:[%s218 + $0x60] sm:$0xff] %v1352
        %1361 = vst [vmem:[%s218 + $0x80] sm:$0xff] %v1353
        %1362 = vst [vmem:[%s218 + $0xa0] sm:$0xff] %v1354
        %1363 = vst [vmem:[%s218 + $0xc0] sm:$0xff] %v1355
        %1364 = vst [vmem:[%s218 + $0xe0] sm:$0xff] %v1356
        %v1365 = vld [vmem:[%s3 + $0x8] sm:$0xff]
        %v1366 = vld [vmem:[%s3 + $0x28] sm:$0xff]
        %1367 = vmatprep.subr.mxu0 0.0
        %1368 = vmatpush1.msra.mxu0 %v1365
        %1369 = vmatprep.subr.mxu0 0.0
        %1370 = vmatpush1.msra.mxu0 %v1366
        %1371 = vmatprep.subr.mxu0 0.0
        %1372 = vmatpush1.msra.mxu0 0.0
        %1373 = vmatprep.subr.mxu0 0.0
        %1374 = vmatpush1.msra.mxu0 0.0
        %1375 = vmatprep.subr.mxu0 0.0
        %1376 = vmatpush1.msra.mxu0 0.0
        %1377 = vmatprep.subr.mxu0 0.0
        %1378 = vmatpush1.msra.mxu0 0.0
        %1379 = vmatprep.subr.mxu0 0.0
        %1380 = vmatpush1.msra.mxu0 0.0
        %1381 = vmatprep.subr.mxu0 0.0
        %1382 = vmatpush1.msra.mxu0 0.0
        %1383 = vmatprep.subr.mxu0 0.0
        %1384 = vmatpush1.msra.mxu0 0.0
        %1385 = vmatprep.subr.mxu0 0.0
        %1386 = vmatpush1.msra.mxu0 0.0
        %1387 = vmatprep.subr.mxu0 0.0
        %1388 = vmatpush1.msra.mxu0 0.0
        %1389 = vmatprep.subr.mxu0 0.0
        %1390 = vmatpush1.msra.mxu0 0.0
        %1391 = vmatprep.subr.mxu0 0.0
        %1392 = vmatpush1.msra.mxu0 0.0
        %1393 = vmatprep.subr.mxu0 0.0
        %1394 = vmatpush1.msra.mxu0 0.0
        %1395 = vmatprep.subr.mxu0 0.0
        %1396 = vmatpush1.msra.mxu0 0.0
        %1397 = vmatprep.subr.mxu0 0.0
        %1398 = vmatpush1.msra.mxu0 0.0
        %1399 = vmatprep.subr.mxu0 0.0
        %1400 = vmatpush1.msra.mxu0 0.0
        %1401 = vmatprep.subr.mxu0 0.0
        %1402 = vmatpush1.msra.mxu0 0.0
        %1403 = vmatprep.subr.mxu0 0.0
        %1404 = vmatpush1.msra.mxu0 0.0
        %1405 = vmatprep.subr.mxu0 0.0
        %1406 = vmatpush1.msra.mxu0 0.0
        %1407 = vmatprep.subr.mxu0 0.0
        %1408 = vmatpush1.msra.mxu0 0.0
        %1409 = vmatprep.subr.mxu0 0.0
        %1410 = vmatpush1.msra.mxu0 0.0
        %1411 = vmatprep.subr.mxu0 0.0
        %1412 = vmatpush1.msra.mxu0 0.0
        %1413 = vmatprep.subr.mxu0 0.0
        %1414 = vmatpush1.msra.mxu0 0.0
        %1415 = vmatprep.subr.mxu0 0.0
        %1416 = vmatpush1.msra.mxu0 0.0
        %1417 = vmatprep.subr.mxu0 0.0
        %1418 = vmatpush1.msra.mxu0 0.0
        %1419 = vmatprep.subr.mxu0 0.0
        %1420 = vmatpush1.msra.mxu0 0.0
        %1421 = vmatprep.subr.mxu0 0.0
        %1422 = vmatpush1.msra.mxu0 0.0
        %1423 = vmatprep.subr.mxu0 0.0
        %1424 = vmatpush1.msra.mxu0 0.0
        %1425 = vmatprep.subr.mxu0 0.0
        %1426 = vmatpush1.msra.mxu0 0.0
        %1427 = vmatprep.subr.mxu0 0.0
        %1428 = vmatpush1.msra.mxu0 0.0
        %1429 = vmatprep.subr.mxu0 0.0
        %1430 = vmatpush1.msra.mxu0 0.0
        %1431 = vmatprep.mubr.f32.mxu0 0.0
        %1432 = vmatmul.mubr.f32.gmra.mrb[0].mxu0 %v1069
        %v1433 = vpop.f32.mrb[0].mxu0
        %v1434 = vadd.f32 0.0, %v1433
        %v1435 = vpop.f32.mrb[0].mxu0
        %1436 = vmatprep.mubr.f32.mxu0 0.0
        %1437 = vmatmul.mubr.f32.gmra.mrb[0].mxu0 %v1072
        %v1438 = vpop.f32.mrb[0].mxu0
        %v1439 = vadd.f32 0.0, %v1438
        %v1440 = vpop.f32.mrb[0].mxu0
        %1441 = vmatprep.mubr.f32.mxu0 0.0
        %1442 = vmatmul.mubr.f32.gmra.mrb[0].mxu0 %v1075
        %v1443 = vpop.f32.mrb[0].mxu0
        %v1444 = vadd.f32 0.0, %v1443
        %v1445 = vpop.f32.mrb[0].mxu0
        %1446 = vmatprep.mubr.f32.mxu0 0.0
        %1447 = vmatmul.mubr.f32.gmra.mrb[0].mxu0 %v1078
        %v1448 = vpop.f32.mrb[0].mxu0
        %v1449 = vadd.f32 0.0, %v1448
        %v1450 = vpop.f32.mrb[0].mxu0
        %1451 = vmatprep.mubr.f32.mxu0 0.0
        %1452 = vmatmul.mubr.f32.gmra.mrb[0].mxu0 %v1081
        %v1453 = vpop.f32.mrb[0].mxu0
        %v1454 = vadd.f32 0.0, %v1453
        %v1455 = vpop.f32.mrb[0].mxu0
        %1456 = vmatprep.mubr.f32.mxu0 0.0
        %1457 = vmatmul.mubr.f32.gmra.mrb[0].mxu0 %v1084
        %v1458 = vpop.f32.mrb[0].mxu0
        %v1459 = vadd.f32 0.0, %v1458
        %v1460 = vpop.f32.mrb[0].mxu0
        %1461 = vmatprep.mubr.f32.mxu0 0.0
        %1462 = vmatmul.mubr.f32.gmra.mrb[0].mxu0 %v1087
        %v1463 = vpop.f32.mrb[0].mxu0
        %v1464 = vadd.f32 0.0, %v1463
        %v1465 = vpop.f32.mrb[0].mxu0
        %1466 = vmatprep.mubr.f32.mxu0 0.0
        %1467 = vmatmul.mubr.f32.gmra.mrb[0].mxu0 %v1090
        %v1468 = vpop.f32.mrb[0].mxu0
        %v1469 = vadd.f32 0.0, %v1468
        %v1470 = vpop.f32.mrb[0].mxu0
        %1471 = vdwg.mxu0
        %1472 = vmatprep.subr.mxu0 0.0
        %1473 = vmatpush1.msra.mxu0 %v1365
        %1474 = vmatprep.subr.mxu0 0.0
        %1475 = vmatpush1.msra.mxu0 %v1366
        %1476 = vmatprep.subr.mxu0 0.0
        %1477 = vmatpush1.msra.mxu0 0.0
        %1478 = vmatprep.subr.mxu0 0.0
        %1479 = vmatpush1.msra.mxu0 0.0
        %1480 = vmatprep.subr.mxu0 0.0
        %1481 = vmatpush1.msra.mxu0 0.0
        %1482 = vmatprep.subr.mxu0 0.0
        %1483 = vmatpush1.msra.mxu0 0.0
        %1484 = vmatprep.subr.mxu0 0.0
        %1485 = vmatpush1.msra.mxu0 0.0
        %1486 = vmatprep.subr.mxu0 0.0
        %1487 = vmatpush1.msra.mxu0 0.0
        %1488 = vmatprep.subr.mxu0 0.0
        %1489 = vmatpush1.msra.mxu0 0.0
        %1490 = vmatprep.subr.mxu0 0.0
        %1491 = vmatpush1.msra.mxu0 0.0
        %1492 = vmatprep.subr.mxu0 0.0
        %1493 = vmatpush1.msra.mxu0 0.0
        %1494 = vmatprep.subr.mxu0 0.0
        %1495 = vmatpush1.msra.mxu0 0.0
        %1496 = vmatprep.subr.mxu0 0.0
        %1497 = vmatpush1.msra.mxu0 0.0
        %1498 = vmatprep.subr.mxu0 0.0
        %1499 = vmatpush1.msra.mxu0 0.0
        %1500 = vmatprep.subr.mxu0 0.0
        %1501 = vmatpush1.msra.mxu0 0.0
        %1502 = vmatprep.subr.mxu0 0.0
        %1503 = vmatpush1.msra.mxu0 0.0
        %1504 = vmatprep.subr.mxu0 0.0
        %1505 = vmatpush1.msra.mxu0 0.0
        %1506 = vmatprep.subr.mxu0 0.0
        %1507 = vmatpush1.msra.mxu0 0.0
        %1508 = vmatprep.subr.mxu0 0.0
        %1509 = vmatpush1.msra.mxu0 0.0
        %1510 = vmatprep.subr.mxu0 0.0
        %1511 = vmatpush1.msra.mxu0 0.0
        %1512 = vmatprep.subr.mxu0 0.0
        %1513 = vmatpush1.msra.mxu0 0.0
        %1514 = vmatprep.subr.mxu0 0.0
        %1515 = vmatpush1.msra.mxu0 0.0
        %1516 = vmatprep.subr.mxu0 0.0
        %1517 = vmatpush1.msra.mxu0 0.0
        %1518 = vmatprep.subr.mxu0 0.0
        %1519 = vmatpush1.msra.mxu0 0.0
        %1520 = vmatprep.subr.mxu0 0.0
        %1521 = vmatpush1.msra.mxu0 0.0
        %1522 = vmatprep.subr.mxu0 0.0
        %1523 = vmatpush1.msra.mxu0 0.0
        %1524 = vmatprep.subr.mxu0 0.0
        %1525 = vmatpush1.msra.mxu0 0.0
        %1526 = vmatprep.subr.mxu0 0.0
        %1527 = vmatpush1.msra.mxu0 0.0
        %1528 = vmatprep.subr.mxu0 0.0
        %1529 = vmatpush1.msra.mxu0 0.0
        %1530 = vmatprep.subr.mxu0 0.0
        %1531 = vmatpush1.msra.mxu0 0.0
        %1532 = vmatprep.subr.mxu0 0.0
        %1533 = vmatpush1.msra.mxu0 0.0
        %1534 = vmatprep.subr.mxu0 0.0
        %1535 = vmatpush1.msra.mxu0 0.0
        %1536 = vmatprep.mubr.f32.mxu0 0.0
        %1537 = vmatmul.mubr.f32.gmra.mrb[0].mxu0 %v1198
        %v1538 = vpop.f32.mrb[0].mxu0
        %v1539 = vadd.f32 0.0, %v1538
        %v1540 = vpop.f32.mrb[0].mxu0
        %1541 = vmatprep.mubr.f32.mxu0 0.0
        %1542 = vmatmul.mubr.f32.gmra.mrb[0].mxu0 %v1201
        %v1543 = vpop.f32.mrb[0].mxu0
        %v1544 = vadd.f32 0.0, %v1543
        %v1545 = vpop.f32.mrb[0].mxu0
        %1546 = vmatprep.mubr.f32.mxu0 0.0
        %1547 = vmatmul.mubr.f32.gmra.mrb[0].mxu0 %v1204
        %v1548 = vpop.f32.mrb[0].mxu0
        %v1549 = vadd.f32 0.0, %v1548
        %v1550 = vpop.f32.mrb[0].mxu0
        %1551 = vmatprep.mubr.f32.mxu0 0.0
        %1552 = vmatmul.mubr.f32.gmra.mrb[0].mxu0 %v1207
        %v1553 = vpop.f32.mrb[0].mxu0
        %v1554 = vadd.f32 0.0, %v1553
        %v1555 = vpop.f32.mrb[0].mxu0
        %1556 = vmatprep.mubr.f32.mxu0 0.0
        %1557 = vmatmul.mubr.f32.gmra.mrb[0].mxu0 %v1210
        %v1558 = vpop.f32.mrb[0].mxu0
        %v1559 = vadd.f32 0.0, %v1558
        %v1560 = vpop.f32.mrb[0].mxu0
        %1561 = vmatprep.mubr.f32.mxu0 0.0
        %1562 = vmatmul.mubr.f32.gmra.mrb[0].mxu0 %v1213
        %v1563 = vpop.f32.mrb[0].mxu0
        %v1564 = vadd.f32 0.0, %v1563
        %v1565 = vpop.f32.mrb[0].mxu0
        %1566 = vmatprep.mubr.f32.mxu0 0.0
        %1567 = vmatmul.mubr.f32.gmra.mrb[0].mxu0 %v1216
        %v1568 = vpop.f32.mrb[0].mxu0
        %v1569 = vadd.f32 0.0, %v1568
        %v1570 = vpop.f32.mrb[0].mxu0
        %1571 = vmatprep.mubr.f32.mxu0 0.0
        %1572 = vmatmul.mubr.f32.gmra.mrb[0].mxu0 %v1219
        %v1573 = vpop.f32.mrb[0].mxu0
        %v1574 = vadd.f32 0.0, %v1573
        %v1575 = vpop.f32.mrb[0].mxu0
        %1576 = vdwg.mxu0
        %v1577 = vmul.f32 %v344, %v1434
        %v1578 = vmul.f32 %v350, %v1439
        %v1579 = vmul.f32 %v356, %v1444
        %v1580 = vmul.f32 %v362, %v1449
        %v1581 = vmul.f32 %v368, %v1454
        %v1582 = vmul.f32 %v374, %v1459
        %v1583 = vmul.f32 %v380, %v1464
        %v1584 = vmul.f32 %v386, %v1469
        %v1585 = vsub.f32 %v1577, %v1539
        %v1586 = vsub.f32 %v1578, %v1544
        %v1587 = vsub.f32 %v1579, %v1549
        %v1588 = vsub.f32 %v1580, %v1554
        %v1589 = vsub.f32 %v1581, %v1559
        %v1590 = vsub.f32 %v1582, %v1564
        %v1591 = vsub.f32 %v1583, %v1569
        %v1592 = vsub.f32 %v1584, %v1574
        %v1593 = vld [vmem:[%s4 + $0x1] sm:$0x1]
        %v1595 = vlaneseq
        %v1596 = vshrl.u32 %v1595, 7
        %v1597 = vsub.s32 0, %v1596
        %v1598 = vrot.slane %v1593, %v1597
        %v1600 = vadd.f32 %v1585, %v1598
        %v1601 = vadd.f32 %v1586, %v1598
        %v1602 = vadd.f32 %v1587, %v1598
        %v1603 = vadd.f32 %v1588, %v1598
        %v1604 = vadd.f32 %v1589, %v1598
        %v1605 = vadd.f32 %v1590, %v1598
        %v1606 = vadd.f32 %v1591, %v1598
        %v1607 = vadd.f32 %v1592, %v1598
        %s1608 = scalar_lea.vmem %s218, 8 [#allocation2]
        %1609 = vst [vmem:[%s1608] sm:$0xff] %v1600
        %1610 = vst [vmem:[%s1608 + $0x20] sm:$0xff] %v1601
        %1611 = vst [vmem:[%s1608 + $0x40] sm:$0xff] %v1602
        %1612 = vst [vmem:[%s1608 + $0x60] sm:$0xff] %v1603
        %1613 = vst [vmem:[%s1608 + $0x80] sm:$0xff] %v1604
        %1614 = vst [vmem:[%s1608 + $0xa0] sm:$0xff] %v1605
        %1615 = vst [vmem:[%s1608 + $0xc0] sm:$0xff] %v1606
        %1616 = vst [vmem:[%s1608 + $0xe0] sm:$0xff] %v1607
        %v1617 = vld [vmem:[%s3 + $0x10] sm:$0xff]
        %v1618 = vld [vmem:[%s3 + $0x30] sm:$0xff]
        %1619 = vmatprep.subr.mxu0 0.0
        %1620 = vmatpush1.msra.mxu0 %v1617
        %1621 = vmatprep.subr.mxu0 0.0
        %1622 = vmatpush1.msra.mxu0 %v1618
        %1623 = vmatprep.subr.mxu0 0.0
        %1624 = vmatpush1.msra.mxu0 0.0
        %1625 = vmatprep.subr.mxu0 0.0
        %1626 = vmatpush1.msra.mxu0 0.0
        %1627 = vmatprep.subr.mxu0 0.0
        %1628 = vmatpush1.msra.mxu0 0.0
        %1629 = vmatprep.subr.mxu0 0.0
        %1630 = vmatpush1.msra.mxu0 0.0
        %1631 = vmatprep.subr.mxu0 0.0
        %1632 = vmatpush1.msra.mxu0 0.0
        %1633 = vmatprep.subr.mxu0 0.0
        %1634 = vmatpush1.msra.mxu0 0.0
        %1635 = vmatprep.subr.mxu0 0.0
        %1636 = vmatpush1.msra.mxu0 0.0
        %1637 = vmatprep.subr.mxu0 0.0
        %1638 = vmatpush1.msra.mxu0 0.0
        %1639 = vmatprep.subr.mxu0 0.0
        %1640 = vmatpush1.msra.mxu0 0.0
        %1641 = vmatprep.subr.mxu0 0.0
        %1642 = vmatpush1.msra.mxu0 0.0
        %1643 = vmatprep.subr.mxu0 0.0
        %1644 = vmatpush1.msra.mxu0 0.0
        %1645 = vmatprep.subr.mxu0 0.0
        %1646 = vmatpush1.msra.mxu0 0.0
        %1647 = vmatprep.subr.mxu0 0.0
        %1648 = vmatpush1.msra.mxu0 0.0
        %1649 = vmatprep.subr.mxu0 0.0
        %1650 = vmatpush1.msra.mxu0 0.0
        %1651 = vmatprep.subr.mxu0 0.0
        %1652 = vmatpush1.msra.mxu0 0.0
        %1653 = vmatprep.subr.mxu0 0.0
        %1654 = vmatpush1.msra.mxu0 0.0
        %1655 = vmatprep.subr.mxu0 0.0
        %1656 = vmatpush1.msra.mxu0 0.0
        %1657 = vmatprep.subr.mxu0 0.0
        %1658 = vmatpush1.msra.mxu0 0.0
        %1659 = vmatprep.subr.mxu0 0.0
        %1660 = vmatpush1.msra.mxu0 0.0
        %1661 = vmatprep.subr.mxu0 0.0
        %1662 = vmatpush1.msra.mxu0 0.0
        %1663 = vmatprep.subr.mxu0 0.0
        %1664 = vmatpush1.msra.mxu0 0.0
        %1665 = vmatprep.subr.mxu0 0.0
        %1666 = vmatpush1.msra.mxu0 0.0
        %1667 = vmatprep.subr.mxu0 0.0
        %1668 = vmatpush1.msra.mxu0 0.0
        %1669 = vmatprep.subr.mxu0 0.0
        %1670 = vmatpush1.msra.mxu0 0.0
        %1671 = vmatprep.subr.mxu0 0.0
        %1672 = vmatpush1.msra.mxu0 0.0
        %1673 = vmatprep.subr.mxu0 0.0
        %1674 = vmatpush1.msra.mxu0 0.0
        %1675 = vmatprep.subr.mxu0 0.0
        %1676 = vmatpush1.msra.mxu0 0.0
        %1677 = vmatprep.subr.mxu0 0.0
        %1678 = vmatpush1.msra.mxu0 0.0
        %1679 = vmatprep.subr.mxu0 0.0
        %1680 = vmatpush1.msra.mxu0 0.0
        %1681 = vmatprep.subr.mxu0 0.0
        %1682 = vmatpush1.msra.mxu0 0.0
        %1683 = vmatprep.mubr.f32.mxu0 0.0
        %1684 = vmatmul.mubr.f32.gmra.mrb[0].mxu0 %v1069
        %v1685 = vpop.f32.mrb[0].mxu0
        %v1686 = vadd.f32 0.0, %v1685
        %v1687 = vpop.f32.mrb[0].mxu0
        %1688 = vmatprep.mubr.f32.mxu0 0.0
        %1689 = vmatmul.mubr.f32.gmra.mrb[0].mxu0 %v1072
        %v1690 = vpop.f32.mrb[0].mxu0
        %v1691 = vadd.f32 0.0, %v1690
        %v1692 = vpop.f32.mrb[0].mxu0
        %1693 = vmatprep.mubr.f32.mxu0 0.0
        %1694 = vmatmul.mubr.f32.gmra.mrb[0].mxu0 %v1075
        %v1695 = vpop.f32.mrb[0].mxu0
        %v1696 = vadd.f32 0.0, %v1695
        %v1697 = vpop.f32.mrb[0].mxu0
        %1698 = vmatprep.mubr.f32.mxu0 0.0
        %1699 = vmatmul.mubr.f32.gmra.mrb[0].mxu0 %v1078
        %v1700 = vpop.f32.mrb[0].mxu0
        %v1701 = vadd.f32 0.0, %v1700
        %v1702 = vpop.f32.mrb[0].mxu0
        %1703 = vmatprep.mubr.f32.mxu0 0.0
        %1704 = vmatmul.mubr.f32.gmra.mrb[0].mxu0 %v1081
        %v1705 = vpop.f32.mrb[0].mxu0
        %v1706 = vadd.f32 0.0, %v1705
        %v1707 = vpop.f32.mrb[0].mxu0
        %1708 = vmatprep.mubr.f32.mxu0 0.0
        %1709 = vmatmul.mubr.f32.gmra.mrb[0].mxu0 %v1084
        %v1710 = vpop.f32.mrb[0].mxu0
        %v1711 = vadd.f32 0.0, %v1710
        %v1712 = vpop.f32.mrb[0].mxu0
        %1713 = vmatprep.mubr.f32.mxu0 0.0
        %1714 = vmatmul.mubr.f32.gmra.mrb[0].mxu0 %v1087
        %v1715 = vpop.f32.mrb[0].mxu0
        %v1716 = vadd.f32 0.0, %v1715
        %v1717 = vpop.f32.mrb[0].mxu0
        %1718 = vmatprep.mubr.f32.mxu0 0.0
        %1719 = vmatmul.mubr.f32.gmra.mrb[0].mxu0 %v1090
        %v1720 = vpop.f32.mrb[0].mxu0
        %v1721 = vadd.f32 0.0, %v1720
        %v1722 = vpop.f32.mrb[0].mxu0
        %1723 = vdwg.mxu0
        %1724 = vmatprep.subr.mxu0 0.0
        %1725 = vmatpush1.msra.mxu0 %v1617
        %1726 = vmatprep.subr.mxu0 0.0
        %1727 = vmatpush1.msra.mxu0 %v1618
        %1728 = vmatprep.subr.mxu0 0.0
        %1729 = vmatpush1.msra.mxu0 0.0
        %1730 = vmatprep.subr.mxu0 0.0
        %1731 = vmatpush1.msra.mxu0 0.0
        %1732 = vmatprep.subr.mxu0 0.0
        %1733 = vmatpush1.msra.mxu0 0.0
        %1734 = vmatprep.subr.mxu0 0.0
        %1735 = vmatpush1.msra.mxu0 0.0
        %1736 = vmatprep.subr.mxu0 0.0
        %1737 = vmatpush1.msra.mxu0 0.0
        %1738 = vmatprep.subr.mxu0 0.0
        %1739 = vmatpush1.msra.mxu0 0.0
        %1740 = vmatprep.subr.mxu0 0.0
        %1741 = vmatpush1.msra.mxu0 0.0
        %1742 = vmatprep.subr.mxu0 0.0
        %1743 = vmatpush1.msra.mxu0 0.0
        %1744 = vmatprep.subr.mxu0 0.0
        %1745 = vmatpush1.msra.mxu0 0.0
        %1746 = vmatprep.subr.mxu0 0.0
        %1747 = vmatpush1.msra.mxu0 0.0
        %1748 = vmatprep.subr.mxu0 0.0
        %1749 = vmatpush1.msra.mxu0 0.0
        %1750 = vmatprep.subr.mxu0 0.0
        %1751 = vmatpush1.msra.mxu0 0.0
        %1752 = vmatprep.subr.mxu0 0.0
        %1753 = vmatpush1.msra.mxu0 0.0
        %1754 = vmatprep.subr.mxu0 0.0
        %1755 = vmatpush1.msra.mxu0 0.0
        %1756 = vmatprep.subr.mxu0 0.0
        %1757 = vmatpush1.msra.mxu0 0.0
        %1758 = vmatprep.subr.mxu0 0.0
        %1759 = vmatpush1.msra.mxu0 0.0
        %1760 = vmatprep.subr.mxu0 0.0
        %1761 = vmatpush1.msra.mxu0 0.0
        %1762 = vmatprep.subr.mxu0 0.0
        %1763 = vmatpush1.msra.mxu0 0.0
        %1764 = vmatprep.subr.mxu0 0.0
        %1765 = vmatpush1.msra.mxu0 0.0
        %1766 = vmatprep.subr.mxu0 0.0
        %1767 = vmatpush1.msra.mxu0 0.0
        %1768 = vmatprep.subr.mxu0 0.0
        %1769 = vmatpush1.msra.mxu0 0.0
        %1770 = vmatprep.subr.mxu0 0.0
        %1771 = vmatpush1.msra.mxu0 0.0
        %1772 = vmatprep.subr.mxu0 0.0
        %1773 = vmatpush1.msra.mxu0 0.0
        %1774 = vmatprep.subr.mxu0 0.0
        %1775 = vmatpush1.msra.mxu0 0.0
        %1776 = vmatprep.subr.mxu0 0.0
        %1777 = vmatpush1.msra.mxu0 0.0
        %1778 = vmatprep.subr.mxu0 0.0
        %1779 = vmatpush1.msra.mxu0 0.0
        %1780 = vmatprep.subr.mxu0 0.0
        %1781 = vmatpush1.msra.mxu0 0.0
        %1782 = vmatprep.subr.mxu0 0.0
        %1783 = vmatpush1.msra.mxu0 0.0
        %1784 = vmatprep.subr.mxu0 0.0
        %1785 = vmatpush1.msra.mxu0 0.0
        %1786 = vmatprep.subr.mxu0 0.0
        %1787 = vmatpush1.msra.mxu0 0.0
        %1788 = vmatprep.mubr.f32.mxu0 0.0
        %1789 = vmatmul.mubr.f32.gmra.mrb[0].mxu0 %v1198
        %v1790 = vpop.f32.mrb[0].mxu0
        %v1791 = vadd.f32 0.0, %v1790
        %v1792 = vpop.f32.mrb[0].mxu0
        %1793 = vmatprep.mubr.f32.mxu0 0.0
        %1794 = vmatmul.mubr.f32.gmra.mrb[0].mxu0 %v1201
        %v1795 = vpop.f32.mrb[0].mxu0
        %v1796 = vadd.f32 0.0, %v1795
        %v1797 = vpop.f32.mrb[0].mxu0
        %1798 = vmatprep.mubr.f32.mxu0 0.0
        %1799 = vmatmul.mubr.f32.gmra.mrb[0].mxu0 %v1204
        %v1800 = vpop.f32.mrb[0].mxu0
        %v1801 = vadd.f32 0.0, %v1800
        %v1802 = vpop.f32.mrb[0].mxu0
        %1803 = vmatprep.mubr.f32.mxu0 0.0
        %1804 = vmatmul.mubr.f32.gmra.mrb[0].mxu0 %v1207
        %v1805 = vpop.f32.mrb[0].mxu0
        %v1806 = vadd.f32 0.0, %v1805
        %v1807 = vpop.f32.mrb[0].mxu0
        %1808 = vmatprep.mubr.f32.mxu0 0.0
        %1809 = vmatmul.mubr.f32.gmra.mrb[0].mxu0 %v1210
        %v1810 = vpop.f32.mrb[0].mxu0
        %v1811 = vadd.f32 0.0, %v1810
        %v1812 = vpop.f32.mrb[0].mxu0
        %1813 = vmatprep.mubr.f32.mxu0 0.0
        %1814 = vmatmul.mubr.f32.gmra.mrb[0].mxu0 %v1213
        %v1815 = vpop.f32.mrb[0].mxu0
        %v1816 = vadd.f32 0.0, %v1815
        %v1817 = vpop.f32.mrb[0].mxu0
        %1818 = vmatprep.mubr.f32.mxu0 0.0
        %1819 = vmatmul.mubr.f32.gmra.mrb[0].mxu0 %v1216
        %v1820 = vpop.f32.mrb[0].mxu0
        %v1821 = vadd.f32 0.0, %v1820
        %v1822 = vpop.f32.mrb[0].mxu0
        %1823 = vmatprep.mubr.f32.mxu0 0.0
        %1824 = vmatmul.mubr.f32.gmra.mrb[0].mxu0 %v1219
        %v1825 = vpop.f32.mrb[0].mxu0
        %v1826 = vadd.f32 0.0, %v1825
        %v1827 = vpop.f32.mrb[0].mxu0
        %1828 = vdwg.mxu0
        %v1829 = vmul.f32 %v455, %v1686
        %v1830 = vmul.f32 %v461, %v1691
        %v1831 = vmul.f32 %v467, %v1696
        %v1832 = vmul.f32 %v473, %v1701
        %v1833 = vmul.f32 %v479, %v1706
        %v1834 = vmul.f32 %v485, %v1711
        %v1835 = vmul.f32 %v491, %v1716
        %v1836 = vmul.f32 %v497, %v1721
        %v1837 = vsub.f32 %v1829, %v1791
        %v1838 = vsub.f32 %v1830, %v1796
        %v1839 = vsub.f32 %v1831, %v1801
        %v1840 = vsub.f32 %v1832, %v1806
        %v1841 = vsub.f32 %v1833, %v1811
        %v1842 = vsub.f32 %v1834, %v1816
        %v1843 = vsub.f32 %v1835, %v1821
        %v1844 = vsub.f32 %v1836, %v1826
        %v1845 = vld [vmem:[%s4 + $0x2] sm:$0x1]
        %v1847 = vlaneseq
        %v1848 = vshrl.u32 %v1847, 7
        %v1849 = vsub.s32 0, %v1848
        %v1850 = vrot.slane %v1845, %v1849
        %v1852 = vadd.f32 %v1837, %v1850
        %v1853 = vadd.f32 %v1838, %v1850
        %v1854 = vadd.f32 %v1839, %v1850
        %v1855 = vadd.f32 %v1840, %v1850
        %v1856 = vadd.f32 %v1841, %v1850
        %v1857 = vadd.f32 %v1842, %v1850
        %v1858 = vadd.f32 %v1843, %v1850
        %v1859 = vadd.f32 %v1844, %v1850
        %s1860 = scalar_lea.vmem %s218, 16 [#allocation2]
        %1861 = vst [vmem:[%s1860] sm:$0xff] %v1852
        %1862 = vst [vmem:[%s1860 + $0x20] sm:$0xff] %v1853
        %1863 = vst [vmem:[%s1860 + $0x40] sm:$0xff] %v1854
        %1864 = vst [vmem:[%s1860 + $0x60] sm:$0xff] %v1855
        %1865 = vst [vmem:[%s1860 + $0x80] sm:$0xff] %v1856
        %1866 = vst [vmem:[%s1860 + $0xa0] sm:$0xff] %v1857
        %1867 = vst [vmem:[%s1860 + $0xc0] sm:$0xff] %v1858
        %1868 = vst [vmem:[%s1860 + $0xe0] sm:$0xff] %v1859
        %v1869 = vld [vmem:[%s3 + $0x18] sm:$0xff]
        %v1870 = vld [vmem:[%s3 + $0x38] sm:$0xff]
        %1871 = vmatprep.subr.mxu0 0.0
        %1872 = vmatpush1.msra.mxu0 %v1869
        %1873 = vmatprep.subr.mxu0 0.0
        %1874 = vmatpush1.msra.mxu0 %v1870
        %1875 = vmatprep.subr.mxu0 0.0
        %1876 = vmatpush1.msra.mxu0 0.0
        %1877 = vmatprep.subr.mxu0 0.0
        %1878 = vmatpush1.msra.mxu0 0.0
        %1879 = vmatprep.subr.mxu0 0.0
        %1880 = vmatpush1.msra.mxu0 0.0
        %1881 = vmatprep.subr.mxu0 0.0
        %1882 = vmatpush1.msra.mxu0 0.0
        %1883 = vmatprep.subr.mxu0 0.0
        %1884 = vmatpush1.msra.mxu0 0.0
        %1885 = vmatprep.subr.mxu0 0.0
        %1886 = vmatpush1.msra.mxu0 0.0
        %1887 = vmatprep.subr.mxu0 0.0
        %1888 = vmatpush1.msra.mxu0 0.0
        %1889 = vmatprep.subr.mxu0 0.0
        %1890 = vmatpush1.msra.mxu0 0.0
        %1891 = vmatprep.subr.mxu0 0.0
        %1892 = vmatpush1.msra.mxu0 0.0
        %1893 = vmatprep.subr.mxu0 0.0
        %1894 = vmatpush1.msra.mxu0 0.0
        %1895 = vmatprep.subr.mxu0 0.0
        %1896 = vmatpush1.msra.mxu0 0.0
        %1897 = vmatprep.subr.mxu0 0.0
        %1898 = vmatpush1.msra.mxu0 0.0
        %1899 = vmatprep.subr.mxu0 0.0
        %1900 = vmatpush1.msra.mxu0 0.0
        %1901 = vmatprep.subr.mxu0 0.0
        %1902 = vmatpush1.msra.mxu0 0.0
        %1903 = vmatprep.subr.mxu0 0.0
        %1904 = vmatpush1.msra.mxu0 0.0
        %1905 = vmatprep.subr.mxu0 0.0
        %1906 = vmatpush1.msra.mxu0 0.0
        %1907 = vmatprep.subr.mxu0 0.0
        %1908 = vmatpush1.msra.mxu0 0.0
        %1909 = vmatprep.subr.mxu0 0.0
        %1910 = vmatpush1.msra.mxu0 0.0
        %1911 = vmatprep.subr.mxu0 0.0
        %1912 = vmatpush1.msra.mxu0 0.0
        %1913 = vmatprep.subr.mxu0 0.0
        %1914 = vmatpush1.msra.mxu0 0.0
        %1915 = vmatprep.subr.mxu0 0.0
        %1916 = vmatpush1.msra.mxu0 0.0
        %1917 = vmatprep.subr.mxu0 0.0
        %1918 = vmatpush1.msra.mxu0 0.0
        %1919 = vmatprep.subr.mxu0 0.0
        %1920 = vmatpush1.msra.mxu0 0.0
        %1921 = vmatprep.subr.mxu0 0.0
        %1922 = vmatpush1.msra.mxu0 0.0
        %1923 = vmatprep.subr.mxu0 0.0
        %1924 = vmatpush1.msra.mxu0 0.0
        %1925 = vmatprep.subr.mxu0 0.0
        %1926 = vmatpush1.msra.mxu0 0.0
        %1927 = vmatprep.subr.mxu0 0.0
        %1928 = vmatpush1.msra.mxu0 0.0
        %1929 = vmatprep.subr.mxu0 0.0
        %1930 = vmatpush1.msra.mxu0 0.0
        %1931 = vmatprep.subr.mxu0 0.0
        %1932 = vmatpush1.msra.mxu0 0.0
        %1933 = vmatprep.subr.mxu0 0.0
        %1934 = vmatpush1.msra.mxu0 0.0
        %1935 = vmatprep.mubr.f32.mxu0 0.0
        %1936 = vmatmul.mubr.f32.gmra.mrb[0].mxu0 %v1069
        %v1937 = vpop.f32.mrb[0].mxu0
        %v1938 = vadd.f32 0.0, %v1937
        %v1939 = vpop.f32.mrb[0].mxu0
        %1940 = vmatprep.mubr.f32.mxu0 0.0
        %1941 = vmatmul.mubr.f32.gmra.mrb[0].mxu0 %v1072
        %v1942 = vpop.f32.mrb[0].mxu0
        %v1943 = vadd.f32 0.0, %v1942
        %v1944 = vpop.f32.mrb[0].mxu0
        %1945 = vmatprep.mubr.f32.mxu0 0.0
        %1946 = vmatmul.mubr.f32.gmra.mrb[0].mxu0 %v1075
        %v1947 = vpop.f32.mrb[0].mxu0
        %v1948 = vadd.f32 0.0, %v1947
        %v1949 = vpop.f32.mrb[0].mxu0
        %1950 = vmatprep.mubr.f32.mxu0 0.0
        %1951 = vmatmul.mubr.f32.gmra.mrb[0].mxu0 %v1078
        %v1952 = vpop.f32.mrb[0].mxu0
        %v1953 = vadd.f32 0.0, %v1952
        %v1954 = vpop.f32.mrb[0].mxu0
        %1955 = vmatprep.mubr.f32.mxu0 0.0
        %1956 = vmatmul.mubr.f32.gmra.mrb[0].mxu0 %v1081
        %v1957 = vpop.f32.mrb[0].mxu0
        %v1958 = vadd.f32 0.0, %v1957
        %v1959 = vpop.f32.mrb[0].mxu0
        %1960 = vmatprep.mubr.f32.mxu0 0.0
        %1961 = vmatmul.mubr.f32.gmra.mrb[0].mxu0 %v1084
        %v1962 = vpop.f32.mrb[0].mxu0
        %v1963 = vadd.f32 0.0, %v1962
        %v1964 = vpop.f32.mrb[0].mxu0
        %1965 = vmatprep.mubr.f32.mxu0 0.0
        %1966 = vmatmul.mubr.f32.gmra.mrb[0].mxu0 %v1087
        %v1967 = vpop.f32.mrb[0].mxu0
        %v1968 = vadd.f32 0.0, %v1967
        %v1969 = vpop.f32.mrb[0].mxu0
        %1970 = vmatprep.mubr.f32.mxu0 0.0
        %1971 = vmatmul.mubr.f32.gmra.mrb[0].mxu0 %v1090
        %v1972 = vpop.f32.mrb[0].mxu0
        %v1973 = vadd.f32 0.0, %v1972
        %v1974 = vpop.f32.mrb[0].mxu0
        %1975 = vdwg.mxu0
        %1976 = vmatprep.subr.mxu0 0.0
        %1977 = vmatpush1.msra.mxu0 %v1869
        %1978 = vmatprep.subr.mxu0 0.0
        %1979 = vmatpush1.msra.mxu0 %v1870
        %1980 = vmatprep.subr.mxu0 0.0
        %1981 = vmatpush1.msra.mxu0 0.0
        %1982 = vmatprep.subr.mxu0 0.0
        %1983 = vmatpush1.msra.mxu0 0.0
        %1984 = vmatprep.subr.mxu0 0.0
        %1985 = vmatpush1.msra.mxu0 0.0
        %1986 = vmatprep.subr.mxu0 0.0
        %1987 = vmatpush1.msra.mxu0 0.0
        %1988 = vmatprep.subr.mxu0 0.0
        %1989 = vmatpush1.msra.mxu0 0.0
        %1990 = vmatprep.subr.mxu0 0.0
        %1991 = vmatpush1.msra.mxu0 0.0
        %1992 = vmatprep.subr.mxu0 0.0
        %1993 = vmatpush1.msra.mxu0 0.0
        %1994 = vmatprep.subr.mxu0 0.0
        %1995 = vmatpush1.msra.mxu0 0.0
        %1996 = vmatprep.subr.mxu0 0.0
        %1997 = vmatpush1.msra.mxu0 0.0
        %1998 = vmatprep.subr.mxu0 0.0
        %1999 = vmatpush1.msra.mxu0 0.0
        %2000 = vmatprep.subr.mxu0 0.0
        %2001 = vmatpush1.msra.mxu0 0.0
        %2002 = vmatprep.subr.mxu0 0.0
        %2003 = vmatpush1.msra.mxu0 0.0
        %2004 = vmatprep.subr.mxu0 0.0
        %2005 = vmatpush1.msra.mxu0 0.0
        %2006 = vmatprep.subr.mxu0 0.0
        %2007 = vmatpush1.msra.mxu0 0.0
        %2008 = vmatprep.subr.mxu0 0.0
        %2009 = vmatpush1.msra.mxu0 0.0
        %2010 = vmatprep.subr.mxu0 0.0
        %2011 = vmatpush1.msra.mxu0 0.0
        %2012 = vmatprep.subr.mxu0 0.0
        %2013 = vmatpush1.msra.mxu0 0.0
        %2014 = vmatprep.subr.mxu0 0.0
        %2015 = vmatpush1.msra.mxu0 0.0
        %2016 = vmatprep.subr.mxu0 0.0
        %2017 = vmatpush1.msra.mxu0 0.0
        %2018 = vmatprep.subr.mxu0 0.0
        %2019 = vmatpush1.msra.mxu0 0.0
        %2020 = vmatprep.subr.mxu0 0.0
        %2021 = vmatpush1.msra.mxu0 0.0
        %2022 = vmatprep.subr.mxu0 0.0
        %2023 = vmatpush1.msra.mxu0 0.0
        %2024 = vmatprep.subr.mxu0 0.0
        %2025 = vmatpush1.msra.mxu0 0.0
        %2026 = vmatprep.subr.mxu0 0.0
        %2027 = vmatpush1.msra.mxu0 0.0
        %2028 = vmatprep.subr.mxu0 0.0
        %2029 = vmatpush1.msra.mxu0 0.0
        %2030 = vmatprep.subr.mxu0 0.0
        %2031 = vmatpush1.msra.mxu0 0.0
        %2032 = vmatprep.subr.mxu0 0.0
        %2033 = vmatpush1.msra.mxu0 0.0
        %2034 = vmatprep.subr.mxu0 0.0
        %2035 = vmatpush1.msra.mxu0 0.0
        %2036 = vmatprep.subr.mxu0 0.0
        %2037 = vmatpush1.msra.mxu0 0.0
        %2038 = vmatprep.subr.mxu0 0.0
        %2039 = vmatpush1.msra.mxu0 0.0
        %2040 = vmatprep.mubr.f32.mxu0 0.0
        %2041 = vmatmul.mubr.f32.gmra.mrb[0].mxu0 %v1198
        %v2042 = vpop.f32.mrb[0].mxu0
        %v2043 = vadd.f32 0.0, %v2042
        %v2044 = vpop.f32.mrb[0].mxu0
        %2045 = vmatprep.mubr.f32.mxu0 0.0
        %2046 = vmatmul.mubr.f32.gmra.mrb[0].mxu0 %v1201
        %v2047 = vpop.f32.mrb[0].mxu0
        %v2048 = vadd.f32 0.0, %v2047
        %v2049 = vpop.f32.mrb[0].mxu0
        %2050 = vmatprep.mubr.f32.mxu0 0.0
        %2051 = vmatmul.mubr.f32.gmra.mrb[0].mxu0 %v1204
        %v2052 = vpop.f32.mrb[0].mxu0
        %v2053 = vadd.f32 0.0, %v2052
        %v2054 = vpop.f32.mrb[0].mxu0
        %2055 = vmatprep.mubr.f32.mxu0 0.0
        %2056 = vmatmul.mubr.f32.gmra.mrb[0].mxu0 %v1207
        %v2057 = vpop.f32.mrb[0].mxu0
        %v2058 = vadd.f32 0.0, %v2057
        %v2059 = vpop.f32.mrb[0].mxu0
        %2060 = vmatprep.mubr.f32.mxu0 0.0
        %2061 = vmatmul.mubr.f32.gmra.mrb[0].mxu0 %v1210
        %v2062 = vpop.f32.mrb[0].mxu0
        %v2063 = vadd.f32 0.0, %v2062
        %v2064 = vpop.f32.mrb[0].mxu0
        %2065 = vmatprep.mubr.f32.mxu0 0.0
        %2066 = vmatmul.mubr.f32.gmra.mrb[0].mxu0 %v1213
        %v2067 = vpop.f32.mrb[0].mxu0
        %v2068 = vadd.f32 0.0, %v2067
        %v2069 = vpop.f32.mrb[0].mxu0
        %2070 = vmatprep.mubr.f32.mxu0 0.0
        %2071 = vmatmul.mubr.f32.gmra.mrb[0].mxu0 %v1216
        %v2072 = vpop.f32.mrb[0].mxu0
        %v2073 = vadd.f32 0.0, %v2072
        %v2074 = vpop.f32.mrb[0].mxu0
        %2075 = vmatprep.mubr.f32.mxu0 0.0
        %2076 = vmatmul.mubr.f32.gmra.mrb[0].mxu0 %v1219
        %v2077 = vpop.f32.mrb[0].mxu0
        %v2078 = vadd.f32 0.0, %v2077
        %v2079 = vpop.f32.mrb[0].mxu0
        %2080 = vdwg.mxu0
        %v2081 = vmul.f32 %v457, %v1938
        %v2082 = vmul.f32 %v463, %v1943
        %v2083 = vmul.f32 %v469, %v1948
        %v2084 = vmul.f32 %v475, %v1953
        %v2085 = vmul.f32 %v481, %v1958
        %v2086 = vmul.f32 %v487, %v1963
        %v2087 = vmul.f32 %v493, %v1968
        %v2088 = vmul.f32 %v499, %v1973
        %v2089 = vsub.f32 %v2081, %v2043
        %v2090 = vsub.f32 %v2082, %v2048
        %v2091 = vsub.f32 %v2083, %v2053
        %v2092 = vsub.f32 %v2084, %v2058
        %v2093 = vsub.f32 %v2085, %v2063
        %v2094 = vsub.f32 %v2086, %v2068
        %v2095 = vsub.f32 %v2087, %v2073
        %v2096 = vsub.f32 %v2088, %v2078
        %v2097 = vld [vmem:[%s4 + $0x3] sm:$0x1]
        %v2099 = vlaneseq
        %v2100 = vshrl.u32 %v2099, 7
        %v2101 = vsub.s32 0, %v2100
        %v2102 = vrot.slane %v2097, %v2101
        %v2104 = vadd.f32 %v2089, %v2102
        %v2105 = vadd.f32 %v2090, %v2102
        %v2106 = vadd.f32 %v2091, %v2102
        %v2107 = vadd.f32 %v2092, %v2102
        %v2108 = vadd.f32 %v2093, %v2102
        %v2109 = vadd.f32 %v2094, %v2102
        %v2110 = vadd.f32 %v2095, %v2102
        %v2111 = vadd.f32 %v2096, %v2102
        %s2112 = scalar_lea.vmem %s218, 24 [#allocation2]
        %2113 = vst [vmem:[%s2112] sm:$0xff] %v2104
        %2114 = vst [vmem:[%s2112 + $0x20] sm:$0xff] %v2105
        %2115 = vst [vmem:[%s2112 + $0x40] sm:$0xff] %v2106
        %2116 = vst [vmem:[%s2112 + $0x60] sm:$0xff] %v2107
        %2117 = vst [vmem:[%s2112 + $0x80] sm:$0xff] %v2108
        %2118 = vst [vmem:[%s2112 + $0xa0] sm:$0xff] %v2109
        %2119 = vst [vmem:[%s2112 + $0xc0] sm:$0xff] %v2110
        %2120 = vst [vmem:[%s2112 + $0xe0] sm:$0xff] %v2111
        %s2121 = sand.u32 %s137, 1
        %s2122 = scalar_lea.sflag [#allocation3], %s2121
        %s2123 = sand.u32 %s137, 1
        %s2124 = smul.addr %s2123, 256
        %s2125 = scalar_lea.vmem [#allocation2], %s2124
        // Predicated region
        $region41: #{tpu_custom_call.1} parent=39 // pred_check
          %p2126 = pneg %p147
        $region42: #{tpu_custom_call.1} parent=39 // pred_check_branch
          %2128 = sbr.rel (%p2126) target = $region44
        $region43: #{tpu_custom_call.1} parent=39 // pred_region
          %s2129 = smul.u32 8, %s19
          %s2131 = ssub.s32 4096, 4096
          %2132 = vsyncadd %s2122, %s2131
          %s2133 = smul.addr %s2129, 4
          %s2134 = smul.addr %s2133, 128
          %s2135 = scalar_lea.hbm %s5, %s2134
          %s2136 = sshll.u32 %s2125, 4
          %s2137 = int_to_ptr.vmem [resolvable:$true] %s2136
          %2142 = dma.vmem_to_hbm [thread:$0]  %s2137, 4096, %s2135, %s2122, 128, 128, 8
        $region44: #{tpu_custom_call.1} parent=39 // pred_fallthru
          _
      $region40: #{tpu_custom_call.1} parent=5 // pred_fallthru
        _
      %p2143 = scmp.le.s32.totalorder 2, %s14
      // Predicated region
      $region45: #{tpu_custom_call.1} parent=5 // pred_check
        %p2144 = pneg %p2143
      $region46: #{tpu_custom_call.1} parent=5 // pred_check_branch
        %2146 = sbr.rel (%p2144) target = $region48
      $region47: #{tpu_custom_call.1} parent=5 // pred_region
        %s2147 = ssub.s32 %s14, 2
        // Predicated region
        $region49: #{tpu_custom_call.1} parent=47 // pred_check
          %p2148 = pneg %p153
        $region50: #{tpu_custom_call.1} parent=47 // pred_check_branch
          %2150 = sbr.rel (%p2148) target = $region52
        $region51: #{tpu_custom_call.1} parent=47 // pred_region
          %s2151 = sand.u32 %s138, 1
          %s2152 = scalar_lea.sflag [#allocation3], %s2151
          %s2153 = sand.u32 %s138, 1
          %s2154 = smul.addr %s2153, 256
          %s2155 = scalar_lea.vmem [#allocation2], %s2154
          %2156 = dma.done %s2152, 4096
        $region52: #{tpu_custom_call.1} parent=47 // pred_fallthru
          _
      $region48: #{tpu_custom_call.1} parent=5 // pred_fallthru
        _
    $region6: #{tpu_custom_call.1} parent=1 // loop_footer
      %s18 = sadd.s32 1, %s14
    $region7: #{tpu_custom_call.1} parent=1 // loop_footer_branch
      %13 = sbr.rel target = $region3
    $region8: #{tpu_custom_call.1} parent=1 // loop_exit
      _
    %2157 = vsyncpa [#allocation3], 1
    %s2158 = scalar_lea.sflag [#allocation3], 1
    %2159 = vsyncpa %s2158, 1

</llo_original>
